<compile_context>
chip_gen: v6e
topology: v6e:2x2x1
jax: 0.10.0
libtpu: 0.0.40
codegen_flags: <defaults>
</compile_context>

<pallas_src>
import jax
import jax.numpy as jnp
from jax.experimental import pallas as pl
from jax.experimental.pallas import tpu as pltpu


def _make_convt_sigmoid_kernel(B, Cin, Cout, H, W, K):
    PAD = K - 1
    Hout, Wout = H + K - 1, W + K - 1
    Hp, Wp = H + 2 * PAD, W + 2 * PAD
    L = Hout * Wp                      # "wide" flattened output length (keeps padded row stride Wp)
    TAPS = K * K * Cin

    # Wide-stride trick bound: largest read is tap offset (K-1)*Wp + (K-1) plus L elements.
    # It must fit the scratch row length Hp*Wp + (K-1) (VMEM OOB is unchecked -> static assert).
    assert (K - 1) * Wp + (K - 1) + L <= Hp * Wp + (K - 1), "padded-scratch tail too small"

    def kernel(x_ref, w_ref, o_ref, xp_ref):
        # x_ref : (B, Cin, H*W)            VMEM  NCHW batch block, spatial flattened on lanes
        # w_ref : (Cout, TAPS + 1)         VMEM  per-tap weight columns (flip folded) + bias col
        # o_ref : (B, Cout, Hout*Wout)     VMEM  lane-dense output block
        # xp_ref: (B*Cin, Hp*Wp + K - 1)   VMEM  zero-padded flattened input (+ wide-slice tail)

        # Zero-fill + pad-copy every grid step (each core owns its scratch; a few vreg stores).
        xp_ref[...] = jnp.zeros_like(xp_ref)
        for b in range(B):
            for r in range(H):
                xp_ref[pl.ds(b * Cin, Cin), pl.ds((r + PAD) * Wp + PAD, W)] = \
                    x_ref[b, :, pl.ds(r * W, W)]

        w_all = w_ref[...]                               # (Cout, TAPS+1): one tiny VMEM load
        bias_col = w_all[:, TAPS:TAPS + 1]               # (Cout, 1)

        # One (Cout, L) accumulator per batch element; 36 broadcast FMAs on the VPU.
        accs = [jnp.broadcast_to(bias_col, (Cout, L)) for _ in range(B)]
        for kh in range(K):
            for kw in range(K):
                off = kh * Wp + kw
                sl = xp_ref[:, pl.ds(off, L)]            # (B*Cin, L): static lane-offset read
                for i in range(Cin):
                    t = (kh * K + kw) * Cin + i
                    wc = w_all[:, t:t + 1]               # (Cout, 1) weight column for this tap
                    for b in range(B):
                        xi = sl[b * Cin + i:b * Cin + i + 1, :]    # (1, L)
                        accs[b] = accs[b] + wc * xi                # (Cout, L) broadcast FMA

        # Sigmoid on the EUP; drop the K-1 wrap columns per row at store time (lane-dense stores).
        for b in range(B):
            y = jax.nn.sigmoid(accs[b])                  # (Cout, L)
            for r in range(Hout):
                o_ref[b, :, pl.ds(r * Wout, Wout)] = y[:, r * Wp:r * Wp + Wout]

    return kernel


def _pick_batch_block(N):
    # Fatter grid steps amortize per-step overhead / DMAs and fill sublanes, but keep the grid
    # length >= 2 so both TensorCores on a v7x chip get work.
    for b in (8, 4, 2):
        if N % b == 0 and N // b >= 2:
            return b
    return 1


@jax.jit
def conv_transpose2d_sigmoid(x_nchw, weight_pt, bias):
    """ConvTranspose2d(stride=1, padding=0, output_padding=0) + Sigmoid.

    x_nchw   : (N, Cin, H, W)        consumed directly in NCHW
    weight_pt: (Cin, Cout, K, K)     PyTorch ConvTranspose2d weight layout (unflipped)
    bias     : (Cout,)
    returns  : (N, Cout, H+K-1, W+K-1) float32, NCHW
    """
    N, Cin, H, W = x_nchw.shape
    Cin_w, Cout, K, K2 = weight_pt.shape
    assert Cin == Cin_w and K == K2
    PAD = K - 1
    Hout, Wout = H + K - 1, W + K - 1
    Hp, Wp = H + 2 * PAD, W + 2 * PAD
    TAPS = K * K * Cin
    B = _pick_batch_block(N)

    # Activation: metadata-only reshape. Weight: tiny one-time re-layout into per-tap columns,
    # ConvTranspose spatial flip folded in, bias appended as the last column.
    x_flat = x_nchw.reshape(N, Cin, H * W).astype(jnp.float32)
    w_flip = weight_pt[:, :, ::-1, ::-1].astype(jnp.float32)             # (Cin, Cout, K, K)
    w_cols = jnp.transpose(w_flip, (1, 2, 3, 0)).reshape(Cout, TAPS)     # [o, (kh*K+kw)*Cin+i]
    w_packed = jnp.concatenate([w_cols, bias.astype(jnp.float32).reshape(Cout, 1)], axis=1)

    kernel = _make_convt_sigmoid_kernel(B, Cin, Cout, H, W, K)

    out_flat = pl.pallas_call(
        kernel,
        out_shape=jax.ShapeDtypeStruct((N, Cout, Hout * Wout), jnp.float32),
        grid=(N // B,),
        in_specs=[
            pl.BlockSpec((B, Cin, H * W), lambda n: (n, 0, 0)),
            pl.BlockSpec((Cout, TAPS + 1), lambda n: (0, 0)),
        ],
        out_specs=pl.BlockSpec((B, Cout, Hout * Wout), lambda n: (n, 0, 0)),
        scratch_shapes=[pltpu.VMEM((B * Cin, Hp * Wp + K - 1), jnp.float32)],
        compiler_params=pltpu.CompilerParams(dimension_semantics=("parallel",)),
    )(x_flat, w_packed)

    # Metadata-only reshape back to NCHW.
    return out_flat.reshape(N, Cout, Hout, Wout)


if __name__ == "__main__":
    key = jax.random.PRNGKey(0)
    k_x, k_w, k_b = jax.random.split(key, 3)

    N, Cin, H, W = 2, 4, 12, 12
    Cout, K = 3, 3

    x = jax.random.normal(k_x, (N, Cin, H, W), dtype=jnp.float32)
    fan_in = Cin * K * K
    bound = 1.0 / (fan_in ** 0.5)
    weight = jax.random.uniform(k_w, (Cin, Cout, K, K), jnp.float32, -bound, bound)
    bias = jax.random.uniform(k_b, (Cout,), jnp.float32, -bound, bound)

    out = conv_transpose2d_sigmoid(x, weight, bias)
    out = jax.block_until_ready(out)
    assert out.shape == (N, Cout, H + K - 1, W + K - 1), out.shape

    # Pure-JAX reference: transposed conv == correlation of zero-padded input with flipped weights.
    w_oihw = jnp.transpose(weight[:, :, ::-1, ::-1], (1, 0, 2, 3))
    ref = jax.lax.conv_general_dilated(
        x, w_oihw, window_strides=(1, 1),
        padding=[(K - 1, K - 1), (K - 1, K - 1)],
        dimension_numbers=("NCHW", "OIHW", "NCHW"))
    ref = jax.nn.sigmoid(ref + bias.reshape(1, Cout, 1, 1))
    assert jnp.allclose(out, ref, atol=1e-5, rtol=1e-5), float(jnp.abs(out - ref).max())

    print("KERNEL_OK")
</pallas_src>

<mosaic_0001>
module attributes {stable_mosaic.version = 11 : i64} {
  func.func @kernel(%arg0: i32, %arg1: memref<1x4x144xf32, #tpu.memory_space<vmem>>, %arg2: memref<3x37xf32, #tpu.memory_space<vmem>>, %arg3: memref<1x3x196xf32, #tpu.memory_space<vmem>>, %arg4: memref<4x258xf32, #tpu.memory_space<vmem>>) attributes {dimension_semantics = [#tpu.dimension_semantics<parallel>], iteration_bounds = array<i64: 2>, scalar_prefetch = 0 : i64, scratch_operands = 1 : i64, tpu.core_type = #tpu.core_type<tc>, window_params = [{transform_indices = @transform_0, window_bounds = array<i64: 1, 4, 144>}, {pipeline_mode = #tpu.pipeline_mode<synchronous>, transform_indices = @transform_1, window_bounds = array<i64: 3, 37>}, {transform_indices = @transform_2, window_bounds = array<i64: 1, 3, 196>}]} {
    %cst = arith.constant 0.000000e+00 : f32
    %0 = vector.broadcast %cst : f32 to vector<4x258xf32>
    %c0 = arith.constant 0 : index
    %c0_0 = arith.constant 0 : index
    %1 = vector.load %arg4[%c0, %c0_0] : memref<4x258xf32, #tpu.memory_space<vmem>>, vector<4x258xf32>
    tpu.vector_store %arg4[%c0, %c0_0], %0 {strides = array<i32>} : memref<4x258xf32, #tpu.memory_space<vmem>>, vector<4x258xf32>,
    %c0_1 = arith.constant 0 : index
    %c0_2 = arith.constant 0 : index
    %c0_3 = arith.constant 0 : index
    %2 = vector.load %arg1[%c0_1, %c0_2, %c0_3] : memref<1x4x144xf32, #tpu.memory_space<vmem>>, vector<1x4x12xf32>
    %3 = vector.shape_cast %2 : vector<1x4x12xf32> to vector<4x12xf32>
    %c0_4 = arith.constant 0 : index
    %c34 = arith.constant 34 : index
    %4 = vector.load %arg4[%c0_4, %c34] : memref<4x258xf32, #tpu.memory_space<vmem>>, vector<4x12xf32>
    tpu.vector_store %arg4[%c0_4, %c34], %3 {strides = array<i32>} : memref<4x258xf32, #tpu.memory_space<vmem>>, vector<4x12xf32>,
    %c0_5 = arith.constant 0 : index
    %c0_6 = arith.constant 0 : index
    %c12 = arith.constant 12 : index
    %5 = vector.load %arg1[%c0_5, %c0_6, %c12] : memref<1x4x144xf32, #tpu.memory_space<vmem>>, vector<1x4x12xf32>
    %6 = vector.shape_cast %5 : vector<1x4x12xf32> to vector<4x12xf32>
    %c0_7 = arith.constant 0 : index
    %c50 = arith.constant 50 : index
    %7 = vector.load %arg4[%c0_7, %c50] : memref<4x258xf32, #tpu.memory_space<vmem>>, vector<4x12xf32>
    tpu.vector_store %arg4[%c0_7, %c50], %6 {strides = array<i32>} : memref<4x258xf32, #tpu.memory_space<vmem>>, vector<4x12xf32>,
    %c0_8 = arith.constant 0 : index
    %c0_9 = arith.constant 0 : index
    %c24 = arith.constant 24 : index
    %8 = vector.load %arg1[%c0_8, %c0_9, %c24] : memref<1x4x144xf32, #tpu.memory_space<vmem>>, vector<1x4x12xf32>
    %9 = vector.shape_cast %8 : vector<1x4x12xf32> to vector<4x12xf32>
    %c0_10 = arith.constant 0 : index
    %c66 = arith.constant 66 : index
    %10 = vector.load %arg4[%c0_10, %c66] : memref<4x258xf32, #tpu.memory_space<vmem>>, vector<4x12xf32>
    tpu.vector_store %arg4[%c0_10, %c66], %9 {strides = array<i32>} : memref<4x258xf32, #tpu.memory_space<vmem>>, vector<4x12xf32>,
    %c0_11 = arith.constant 0 : index
    %c0_12 = arith.constant 0 : index
    %c36 = arith.constant 36 : index
    %11 = vector.load %arg1[%c0_11, %c0_12, %c36] : memref<1x4x144xf32, #tpu.memory_space<vmem>>, vector<1x4x12xf32>
    %12 = vector.shape_cast %11 : vector<1x4x12xf32> to vector<4x12xf32>
    %c0_13 = arith.constant 0 : index
    %c82 = arith.constant 82 : index
    %13 = vector.load %arg4[%c0_13, %c82] : memref<4x258xf32, #tpu.memory_space<vmem>>, vector<4x12xf32>
    tpu.vector_store %arg4[%c0_13, %c82], %12 {strides = array<i32>} : memref<4x258xf32, #tpu.memory_space<vmem>>, vector<4x12xf32>,
    %c0_14 = arith.constant 0 : index
    %c0_15 = arith.constant 0 : index
    %c48 = arith.constant 48 : index
    %14 = vector.load %arg1[%c0_14, %c0_15, %c48] : memref<1x4x144xf32, #tpu.memory_space<vmem>>, vector<1x4x12xf32>
    %15 = vector.shape_cast %14 : vector<1x4x12xf32> to vector<4x12xf32>
    %c0_16 = arith.constant 0 : index
    %c98 = arith.constant 98 : index
    %16 = vector.load %arg4[%c0_16, %c98] : memref<4x258xf32, #tpu.memory_space<vmem>>, vector<4x12xf32>
    tpu.vector_store %arg4[%c0_16, %c98], %15 {strides = array<i32>} : memref<4x258xf32, #tpu.memory_space<vmem>>, vector<4x12xf32>,
    %c0_17 = arith.constant 0 : index
    %c0_18 = arith.constant 0 : index
    %c60 = arith.constant 60 : index
    %17 = vector.load %arg1[%c0_17, %c0_18, %c60] : memref<1x4x144xf32, #tpu.memory_space<vmem>>, vector<1x4x12xf32>
    %18 = vector.shape_cast %17 : vector<1x4x12xf32> to vector<4x12xf32>
    %c0_19 = arith.constant 0 : index
    %c114 = arith.constant 114 : index
    %19 = vector.load %arg4[%c0_19, %c114] : memref<4x258xf32, #tpu.memory_space<vmem>>, vector<4x12xf32>
    tpu.vector_store %arg4[%c0_19, %c114], %18 {strides = array<i32>} : memref<4x258xf32, #tpu.memory_space<vmem>>, vector<4x12xf32>,
    %c0_20 = arith.constant 0 : index
    %c0_21 = arith.constant 0 : index
    %c72 = arith.constant 72 : index
    %20 = vector.load %arg1[%c0_20, %c0_21, %c72] : memref<1x4x144xf32, #tpu.memory_space<vmem>>, vector<1x4x12xf32>
    %21 = vector.shape_cast %20 : vector<1x4x12xf32> to vector<4x12xf32>
    %c0_22 = arith.constant 0 : index
    %c130 = arith.constant 130 : index
    %22 = vector.load %arg4[%c0_22, %c130] : memref<4x258xf32, #tpu.memory_space<vmem>>, vector<4x12xf32>
    tpu.vector_store %arg4[%c0_22, %c130], %21 {strides = array<i32>} : memref<4x258xf32, #tpu.memory_space<vmem>>, vector<4x12xf32>,
    %c0_23 = arith.constant 0 : index
    %c0_24 = arith.constant 0 : index
    %c84 = arith.constant 84 : index
    %23 = vector.load %arg1[%c0_23, %c0_24, %c84] : memref<1x4x144xf32, #tpu.memory_space<vmem>>, vector<1x4x12xf32>
    %24 = vector.shape_cast %23 : vector<1x4x12xf32> to vector<4x12xf32>
    %c0_25 = arith.constant 0 : index
    %c146 = arith.constant 146 : index
    %25 = vector.load %arg4[%c0_25, %c146] : memref<4x258xf32, #tpu.memory_space<vmem>>, vector<4x12xf32>
    tpu.vector_store %arg4[%c0_25, %c146], %24 {strides = array<i32>} : memref<4x258xf32, #tpu.memory_space<vmem>>, vector<4x12xf32>,
    %c0_26 = arith.constant 0 : index
    %c0_27 = arith.constant 0 : index
    %c96 = arith.constant 96 : index
    %26 = vector.load %arg1[%c0_26, %c0_27, %c96] : memref<1x4x144xf32, #tpu.memory_space<vmem>>, vector<1x4x12xf32>
    %27 = vector.shape_cast %26 : vector<1x4x12xf32> to vector<4x12xf32>
    %c0_28 = arith.constant 0 : index
    %c162 = arith.constant 162 : index
    %28 = vector.load %arg4[%c0_28, %c162] : memref<4x258xf32, #tpu.memory_space<vmem>>, vector<4x12xf32>
    tpu.vector_store %arg4[%c0_28, %c162], %27 {strides = array<i32>} : memref<4x258xf32, #tpu.memory_space<vmem>>, vector<4x12xf32>,
    %c0_29 = arith.constant 0 : index
    %c0_30 = arith.constant 0 : index
    %c108 = arith.constant 108 : index
    %29 = vector.load %arg1[%c0_29, %c0_30, %c108] : memref<1x4x144xf32, #tpu.memory_space<vmem>>, vector<1x4x12xf32>
    %30 = vector.shape_cast %29 : vector<1x4x12xf32> to vector<4x12xf32>
    %c0_31 = arith.constant 0 : index
    %c178 = arith.constant 178 : index
    %31 = vector.load %arg4[%c0_31, %c178] : memref<4x258xf32, #tpu.memory_space<vmem>>, vector<4x12xf32>
    tpu.vector_store %arg4[%c0_31, %c178], %30 {strides = array<i32>} : memref<4x258xf32, #tpu.memory_space<vmem>>, vector<4x12xf32>,
    %c0_32 = arith.constant 0 : index
    %c0_33 = arith.constant 0 : index
    %c120 = arith.constant 120 : index
    %32 = vector.load %arg1[%c0_32, %c0_33, %c120] : memref<1x4x144xf32, #tpu.memory_space<vmem>>, vector<1x4x12xf32>
    %33 = vector.shape_cast %32 : vector<1x4x12xf32> to vector<4x12xf32>
    %c0_34 = arith.constant 0 : index
    %c194 = arith.constant 194 : index
    %34 = vector.load %arg4[%c0_34, %c194] : memref<4x258xf32, #tpu.memory_space<vmem>>, vector<4x12xf32>
    tpu.vector_store %arg4[%c0_34, %c194], %33 {strides = array<i32>} : memref<4x258xf32, #tpu.memory_space<vmem>>, vector<4x12xf32>,
    %c0_35 = arith.constant 0 : index
    %c0_36 = arith.constant 0 : index
    %c132 = arith.constant 132 : index
    %35 = vector.load %arg1[%c0_35, %c0_36, %c132] : memref<1x4x144xf32, #tpu.memory_space<vmem>>, vector<1x4x12xf32>
    %36 = vector.shape_cast %35 : vector<1x4x12xf32> to vector<4x12xf32>
    %c0_37 = arith.constant 0 : index
    %c210 = arith.constant 210 : index
    %37 = vector.load %arg4[%c0_37, %c210] : memref<4x258xf32, #tpu.memory_space<vmem>>, vector<4x12xf32>
    tpu.vector_store %arg4[%c0_37, %c210], %36 {strides = array<i32>} : memref<4x258xf32, #tpu.memory_space<vmem>>, vector<4x12xf32>,
    %c0_38 = arith.constant 0 : index
    %c0_39 = arith.constant 0 : index
    %38 = vector.load %arg2[%c0_38, %c0_39] : memref<3x37xf32, #tpu.memory_space<vmem>>, vector<3x37xf32>
    %39 = vector.extract_strided_slice %38 {offsets = [0, 36], sizes = [3, 1], strides = [1, 1]} : vector<3x37xf32> to vector<3x1xf32>
    %40 = vector.shape_cast %39 : vector<3x1xf32> to vector<3x1xf32>
    %41 = vector.broadcast %40 : vector<3x1xf32> to vector<3x224xf32>
    %c0_40 = arith.constant 0 : index
    %c0_41 = arith.constant 0 : index
    %42 = vector.load %arg4[%c0_40, %c0_41] : memref<4x258xf32, #tpu.memory_space<vmem>>, vector<4x224xf32>
    %43 = vector.extract_strided_slice %38 {offsets = [0, 0], sizes = [3, 1], strides = [1, 1]} : vector<3x37xf32> to vector<3x1xf32>
    %44 = vector.extract_strided_slice %42 {offsets = [0, 0], sizes = [1, 224], strides = [1, 1]} : vector<4x224xf32> to vector<1x224xf32>
    %45 = vector.broadcast %43 : vector<3x1xf32> to vector<3x224xf32>
    %46 = vector.broadcast %44 : vector<1x224xf32> to vector<3x224xf32>
    %47 = arith.mulf %45, %46 : vector<3x224xf32>
    %48 = arith.addf %41, %47 : vector<3x224xf32>
    %49 = vector.extract_strided_slice %38 {offsets = [0, 1], sizes = [3, 1], strides = [1, 1]} : vector<3x37xf32> to vector<3x1xf32>
    %50 = vector.extract_strided_slice %42 {offsets = [1, 0], sizes = [1, 224], strides = [1, 1]} : vector<4x224xf32> to vector<1x224xf32>
    %51 = vector.broadcast %49 : vector<3x1xf32> to vector<3x224xf32>
    %52 = vector.broadcast %50 : vector<1x224xf32> to vector<3x224xf32>
    %53 = arith.mulf %51, %52 : vector<3x224xf32>
    %54 = arith.addf %48, %53 : vector<3x224xf32>
    %55 = vector.extract_strided_slice %38 {offsets = [0, 2], sizes = [3, 1], strides = [1, 1]} : vector<3x37xf32> to vector<3x1xf32>
    %56 = vector.extract_strided_slice %42 {offsets = [2, 0], sizes = [1, 224], strides = [1, 1]} : vector<4x224xf32> to vector<1x224xf32>
    %57 = vector.broadcast %55 : vector<3x1xf32> to vector<3x224xf32>
    %58 = vector.broadcast %56 : vector<1x224xf32> to vector<3x224xf32>
    %59 = arith.mulf %57, %58 : vector<3x224xf32>
    %60 = arith.addf %54, %59 : vector<3x224xf32>
    %61 = vector.extract_strided_slice %38 {offsets = [0, 3], sizes = [3, 1], strides = [1, 1]} : vector<3x37xf32> to vector<3x1xf32>
    %62 = vector.extract_strided_slice %42 {offsets = [3, 0], sizes = [1, 224], strides = [1, 1]} : vector<4x224xf32> to vector<1x224xf32>
    %63 = vector.broadcast %61 : vector<3x1xf32> to vector<3x224xf32>
    %64 = vector.broadcast %62 : vector<1x224xf32> to vector<3x224xf32>
    %65 = arith.mulf %63, %64 : vector<3x224xf32>
    %66 = arith.addf %60, %65 : vector<3x224xf32>
    %c0_42 = arith.constant 0 : index
    %c1 = arith.constant 1 : index
    %67 = vector.load %arg4[%c0_42, %c1] : memref<4x258xf32, #tpu.memory_space<vmem>>, vector<4x224xf32>
    %68 = vector.extract_strided_slice %38 {offsets = [0, 4], sizes = [3, 1], strides = [1, 1]} : vector<3x37xf32> to vector<3x1xf32>
    %69 = vector.extract_strided_slice %67 {offsets = [0, 0], sizes = [1, 224], strides = [1, 1]} : vector<4x224xf32> to vector<1x224xf32>
    %70 = vector.broadcast %68 : vector<3x1xf32> to vector<3x224xf32>
    %71 = vector.broadcast %69 : vector<1x224xf32> to vector<3x224xf32>
    %72 = arith.mulf %70, %71 : vector<3x224xf32>
    %73 = arith.addf %66, %72 : vector<3x224xf32>
    %74 = vector.extract_strided_slice %38 {offsets = [0, 5], sizes = [3, 1], strides = [1, 1]} : vector<3x37xf32> to vector<3x1xf32>
    %75 = vector.extract_strided_slice %67 {offsets = [1, 0], sizes = [1, 224], strides = [1, 1]} : vector<4x224xf32> to vector<1x224xf32>
    %76 = vector.broadcast %74 : vector<3x1xf32> to vector<3x224xf32>
    %77 = vector.broadcast %75 : vector<1x224xf32> to vector<3x224xf32>
    %78 = arith.mulf %76, %77 : vector<3x224xf32>
    %79 = arith.addf %73, %78 : vector<3x224xf32>
    %80 = vector.extract_strided_slice %38 {offsets = [0, 6], sizes = [3, 1], strides = [1, 1]} : vector<3x37xf32> to vector<3x1xf32>
    %81 = vector.extract_strided_slice %67 {offsets = [2, 0], sizes = [1, 224], strides = [1, 1]} : vector<4x224xf32> to vector<1x224xf32>
    %82 = vector.broadcast %80 : vector<3x1xf32> to vector<3x224xf32>
    %83 = vector.broadcast %81 : vector<1x224xf32> to vector<3x224xf32>
    %84 = arith.mulf %82, %83 : vector<3x224xf32>
    %85 = arith.addf %79, %84 : vector<3x224xf32>
    %86 = vector.extract_strided_slice %38 {offsets = [0, 7], sizes = [3, 1], strides = [1, 1]} : vector<3x37xf32> to vector<3x1xf32>
    %87 = vector.extract_strided_slice %67 {offsets = [3, 0], sizes = [1, 224], strides = [1, 1]} : vector<4x224xf32> to vector<1x224xf32>
    %88 = vector.broadcast %86 : vector<3x1xf32> to vector<3x224xf32>
    %89 = vector.broadcast %87 : vector<1x224xf32> to vector<3x224xf32>
    %90 = arith.mulf %88, %89 : vector<3x224xf32>
    %91 = arith.addf %85, %90 : vector<3x224xf32>
    %c0_43 = arith.constant 0 : index
    %c2 = arith.constant 2 : index
    %92 = vector.load %arg4[%c0_43, %c2] : memref<4x258xf32, #tpu.memory_space<vmem>>, vector<4x224xf32>
    %93 = vector.extract_strided_slice %38 {offsets = [0, 8], sizes = [3, 1], strides = [1, 1]} : vector<3x37xf32> to vector<3x1xf32>
    %94 = vector.extract_strided_slice %92 {offsets = [0, 0], sizes = [1, 224], strides = [1, 1]} : vector<4x224xf32> to vector<1x224xf32>
    %95 = vector.broadcast %93 : vector<3x1xf32> to vector<3x224xf32>
    %96 = vector.broadcast %94 : vector<1x224xf32> to vector<3x224xf32>
    %97 = arith.mulf %95, %96 : vector<3x224xf32>
    %98 = arith.addf %91, %97 : vector<3x224xf32>
    %99 = vector.extract_strided_slice %38 {offsets = [0, 9], sizes = [3, 1], strides = [1, 1]} : vector<3x37xf32> to vector<3x1xf32>
    %100 = vector.extract_strided_slice %92 {offsets = [1, 0], sizes = [1, 224], strides = [1, 1]} : vector<4x224xf32> to vector<1x224xf32>
    %101 = vector.broadcast %99 : vector<3x1xf32> to vector<3x224xf32>
    %102 = vector.broadcast %100 : vector<1x224xf32> to vector<3x224xf32>
    %103 = arith.mulf %101, %102 : vector<3x224xf32>
    %104 = arith.addf %98, %103 : vector<3x224xf32>
    %105 = vector.extract_strided_slice %38 {offsets = [0, 10], sizes = [3, 1], strides = [1, 1]} : vector<3x37xf32> to vector<3x1xf32>
    %106 = vector.extract_strided_slice %92 {offsets = [2, 0], sizes = [1, 224], strides = [1, 1]} : vector<4x224xf32> to vector<1x224xf32>
    %107 = vector.broadcast %105 : vector<3x1xf32> to vector<3x224xf32>
    %108 = vector.broadcast %106 : vector<1x224xf32> to vector<3x224xf32>
    %109 = arith.mulf %107, %108 : vector<3x224xf32>
    %110 = arith.addf %104, %109 : vector<3x224xf32>
    %111 = vector.extract_strided_slice %38 {offsets = [0, 11], sizes = [3, 1], strides = [1, 1]} : vector<3x37xf32> to vector<3x1xf32>
    %112 = vector.extract_strided_slice %92 {offsets = [3, 0], sizes = [1, 224], strides = [1, 1]} : vector<4x224xf32> to vector<1x224xf32>
    %113 = vector.broadcast %111 : vector<3x1xf32> to vector<3x224xf32>
    %114 = vector.broadcast %112 : vector<1x224xf32> to vector<3x224xf32>
    %115 = arith.mulf %113, %114 : vector<3x224xf32>
    %116 = arith.addf %110, %115 : vector<3x224xf32>
    %c0_44 = arith.constant 0 : index
    %c16 = arith.constant 16 : index
    %117 = vector.load %arg4[%c0_44, %c16] : memref<4x258xf32, #tpu.memory_space<vmem>>, vector<4x224xf32>
    %118 = vector.extract_strided_slice %38 {offsets = [0, 12], sizes = [3, 1], strides = [1, 1]} : vector<3x37xf32> to vector<3x1xf32>
    %119 = vector.extract_strided_slice %117 {offsets = [0, 0], sizes = [1, 224], strides = [1, 1]} : vector<4x224xf32> to vector<1x224xf32>
    %120 = vector.broadcast %118 : vector<3x1xf32> to vector<3x224xf32>
    %121 = vector.broadcast %119 : vector<1x224xf32> to vector<3x224xf32>
    %122 = arith.mulf %120, %121 : vector<3x224xf32>
    %123 = arith.addf %116, %122 : vector<3x224xf32>
    %124 = vector.extract_strided_slice %38 {offsets = [0, 13], sizes = [3, 1], strides = [1, 1]} : vector<3x37xf32> to vector<3x1xf32>
    %125 = vector.extract_strided_slice %117 {offsets = [1, 0], sizes = [1, 224], strides = [1, 1]} : vector<4x224xf32> to vector<1x224xf32>
    %126 = vector.broadcast %124 : vector<3x1xf32> to vector<3x224xf32>
    %127 = vector.broadcast %125 : vector<1x224xf32> to vector<3x224xf32>
    %128 = arith.mulf %126, %127 : vector<3x224xf32>
    %129 = arith.addf %123, %128 : vector<3x224xf32>
    %130 = vector.extract_strided_slice %38 {offsets = [0, 14], sizes = [3, 1], strides = [1, 1]} : vector<3x37xf32> to vector<3x1xf32>
    %131 = vector.extract_strided_slice %117 {offsets = [2, 0], sizes = [1, 224], strides = [1, 1]} : vector<4x224xf32> to vector<1x224xf32>
    %132 = vector.broadcast %130 : vector<3x1xf32> to vector<3x224xf32>
    %133 = vector.broadcast %131 : vector<1x224xf32> to vector<3x224xf32>
    %134 = arith.mulf %132, %133 : vector<3x224xf32>
    %135 = arith.addf %129, %134 : vector<3x224xf32>
    %136 = vector.extract_strided_slice %38 {offsets = [0, 15], sizes = [3, 1], strides = [1, 1]} : vector<3x37xf32> to vector<3x1xf32>
    %137 = vector.extract_strided_slice %117 {offsets = [3, 0], sizes = [1, 224], strides = [1, 1]} : vector<4x224xf32> to vector<1x224xf32>
    %138 = vector.broadcast %136 : vector<3x1xf32> to vector<3x224xf32>
    %139 = vector.broadcast %137 : vector<1x224xf32> to vector<3x224xf32>
    %140 = arith.mulf %138, %139 : vector<3x224xf32>
    %141 = arith.addf %135, %140 : vector<3x224xf32>
    %c0_45 = arith.constant 0 : index
    %c17 = arith.constant 17 : index
    %142 = vector.load %arg4[%c0_45, %c17] : memref<4x258xf32, #tpu.memory_space<vmem>>, vector<4x224xf32>
    %143 = vector.extract_strided_slice %38 {offsets = [0, 16], sizes = [3, 1], strides = [1, 1]} : vector<3x37xf32> to vector<3x1xf32>
    %144 = vector.extract_strided_slice %142 {offsets = [0, 0], sizes = [1, 224], strides = [1, 1]} : vector<4x224xf32> to vector<1x224xf32>
    %145 = vector.broadcast %143 : vector<3x1xf32> to vector<3x224xf32>
    %146 = vector.broadcast %144 : vector<1x224xf32> to vector<3x224xf32>
    %147 = arith.mulf %145, %146 : vector<3x224xf32>
    %148 = arith.addf %141, %147 : vector<3x224xf32>
    %149 = vector.extract_strided_slice %38 {offsets = [0, 17], sizes = [3, 1], strides = [1, 1]} : vector<3x37xf32> to vector<3x1xf32>
    %150 = vector.extract_strided_slice %142 {offsets = [1, 0], sizes = [1, 224], strides = [1, 1]} : vector<4x224xf32> to vector<1x224xf32>
    %151 = vector.broadcast %149 : vector<3x1xf32> to vector<3x224xf32>
    %152 = vector.broadcast %150 : vector<1x224xf32> to vector<3x224xf32>
    %153 = arith.mulf %151, %152 : vector<3x224xf32>
    %154 = arith.addf %148, %153 : vector<3x224xf32>
    %155 = vector.extract_strided_slice %38 {offsets = [0, 18], sizes = [3, 1], strides = [1, 1]} : vector<3x37xf32> to vector<3x1xf32>
    %156 = vector.extract_strided_slice %142 {offsets = [2, 0], sizes = [1, 224], strides = [1, 1]} : vector<4x224xf32> to vector<1x224xf32>
    %157 = vector.broadcast %155 : vector<3x1xf32> to vector<3x224xf32>
    %158 = vector.broadcast %156 : vector<1x224xf32> to vector<3x224xf32>
    %159 = arith.mulf %157, %158 : vector<3x224xf32>
    %160 = arith.addf %154, %159 : vector<3x224xf32>
    %161 = vector.extract_strided_slice %38 {offsets = [0, 19], sizes = [3, 1], strides = [1, 1]} : vector<3x37xf32> to vector<3x1xf32>
    %162 = vector.extract_strided_slice %142 {offsets = [3, 0], sizes = [1, 224], strides = [1, 1]} : vector<4x224xf32> to vector<1x224xf32>
    %163 = vector.broadcast %161 : vector<3x1xf32> to vector<3x224xf32>
    %164 = vector.broadcast %162 : vector<1x224xf32> to vector<3x224xf32>
    %165 = arith.mulf %163, %164 : vector<3x224xf32>
    %166 = arith.addf %160, %165 : vector<3x224xf32>
    %c0_46 = arith.constant 0 : index
    %c18 = arith.constant 18 : index
    %167 = vector.load %arg4[%c0_46, %c18] : memref<4x258xf32, #tpu.memory_space<vmem>>, vector<4x224xf32>
    %168 = vector.extract_strided_slice %38 {offsets = [0, 20], sizes = [3, 1], strides = [1, 1]} : vector<3x37xf32> to vector<3x1xf32>
    %169 = vector.extract_strided_slice %167 {offsets = [0, 0], sizes = [1, 224], strides = [1, 1]} : vector<4x224xf32> to vector<1x224xf32>
    %170 = vector.broadcast %168 : vector<3x1xf32> to vector<3x224xf32>
    %171 = vector.broadcast %169 : vector<1x224xf32> to vector<3x224xf32>
    %172 = arith.mulf %170, %171 : vector<3x224xf32>
    %173 = arith.addf %166, %172 : vector<3x224xf32>
    %174 = vector.extract_strided_slice %38 {offsets = [0, 21], sizes = [3, 1], strides = [1, 1]} : vector<3x37xf32> to vector<3x1xf32>
    %175 = vector.extract_strided_slice %167 {offsets = [1, 0], sizes = [1, 224], strides = [1, 1]} : vector<4x224xf32> to vector<1x224xf32>
    %176 = vector.broadcast %174 : vector<3x1xf32> to vector<3x224xf32>
    %177 = vector.broadcast %175 : vector<1x224xf32> to vector<3x224xf32>
    %178 = arith.mulf %176, %177 : vector<3x224xf32>
    %179 = arith.addf %173, %178 : vector<3x224xf32>
    %180 = vector.extract_strided_slice %38 {offsets = [0, 22], sizes = [3, 1], strides = [1, 1]} : vector<3x37xf32> to vector<3x1xf32>
    %181 = vector.extract_strided_slice %167 {offsets = [2, 0], sizes = [1, 224], strides = [1, 1]} : vector<4x224xf32> to vector<1x224xf32>
    %182 = vector.broadcast %180 : vector<3x1xf32> to vector<3x224xf32>
    %183 = vector.broadcast %181 : vector<1x224xf32> to vector<3x224xf32>
    %184 = arith.mulf %182, %183 : vector<3x224xf32>
    %185 = arith.addf %179, %184 : vector<3x224xf32>
    %186 = vector.extract_strided_slice %38 {offsets = [0, 23], sizes = [3, 1], strides = [1, 1]} : vector<3x37xf32> to vector<3x1xf32>
    %187 = vector.extract_strided_slice %167 {offsets = [3, 0], sizes = [1, 224], strides = [1, 1]} : vector<4x224xf32> to vector<1x224xf32>
    %188 = vector.broadcast %186 : vector<3x1xf32> to vector<3x224xf32>
    %189 = vector.broadcast %187 : vector<1x224xf32> to vector<3x224xf32>
    %190 = arith.mulf %188, %189 : vector<3x224xf32>
    %191 = arith.addf %185, %190 : vector<3x224xf32>
    %c0_47 = arith.constant 0 : index
    %c32 = arith.constant 32 : index
    %192 = vector.load %arg4[%c0_47, %c32] : memref<4x258xf32, #tpu.memory_space<vmem>>, vector<4x224xf32>
    %193 = vector.extract_strided_slice %38 {offsets = [0, 24], sizes = [3, 1], strides = [1, 1]} : vector<3x37xf32> to vector<3x1xf32>
    %194 = vector.extract_strided_slice %192 {offsets = [0, 0], sizes = [1, 224], strides = [1, 1]} : vector<4x224xf32> to vector<1x224xf32>
    %195 = vector.broadcast %193 : vector<3x1xf32> to vector<3x224xf32>
    %196 = vector.broadcast %194 : vector<1x224xf32> to vector<3x224xf32>
    %197 = arith.mulf %195, %196 : vector<3x224xf32>
    %198 = arith.addf %191, %197 : vector<3x224xf32>
    %199 = vector.extract_strided_slice %38 {offsets = [0, 25], sizes = [3, 1], strides = [1, 1]} : vector<3x37xf32> to vector<3x1xf32>
    %200 = vector.extract_strided_slice %192 {offsets = [1, 0], sizes = [1, 224], strides = [1, 1]} : vector<4x224xf32> to vector<1x224xf32>
    %201 = vector.broadcast %199 : vector<3x1xf32> to vector<3x224xf32>
    %202 = vector.broadcast %200 : vector<1x224xf32> to vector<3x224xf32>
    %203 = arith.mulf %201, %202 : vector<3x224xf32>
    %204 = arith.addf %198, %203 : vector<3x224xf32>
    %205 = vector.extract_strided_slice %38 {offsets = [0, 26], sizes = [3, 1], strides = [1, 1]} : vector<3x37xf32> to vector<3x1xf32>
    %206 = vector.extract_strided_slice %192 {offsets = [2, 0], sizes = [1, 224], strides = [1, 1]} : vector<4x224xf32> to vector<1x224xf32>
    %207 = vector.broadcast %205 : vector<3x1xf32> to vector<3x224xf32>
    %208 = vector.broadcast %206 : vector<1x224xf32> to vector<3x224xf32>
    %209 = arith.mulf %207, %208 : vector<3x224xf32>
    %210 = arith.addf %204, %209 : vector<3x224xf32>
    %211 = vector.extract_strided_slice %38 {offsets = [0, 27], sizes = [3, 1], strides = [1, 1]} : vector<3x37xf32> to vector<3x1xf32>
    %212 = vector.extract_strided_slice %192 {offsets = [3, 0], sizes = [1, 224], strides = [1, 1]} : vector<4x224xf32> to vector<1x224xf32>
    %213 = vector.broadcast %211 : vector<3x1xf32> to vector<3x224xf32>
    %214 = vector.broadcast %212 : vector<1x224xf32> to vector<3x224xf32>
    %215 = arith.mulf %213, %214 : vector<3x224xf32>
    %216 = arith.addf %210, %215 : vector<3x224xf32>
    %c0_48 = arith.constant 0 : index
    %c33 = arith.constant 33 : index
    %217 = vector.load %arg4[%c0_48, %c33] : memref<4x258xf32, #tpu.memory_space<vmem>>, vector<4x224xf32>
    %218 = vector.extract_strided_slice %38 {offsets = [0, 28], sizes = [3, 1], strides = [1, 1]} : vector<3x37xf32> to vector<3x1xf32>
    %219 = vector.extract_strided_slice %217 {offsets = [0, 0], sizes = [1, 224], strides = [1, 1]} : vector<4x224xf32> to vector<1x224xf32>
    %220 = vector.broadcast %218 : vector<3x1xf32> to vector<3x224xf32>
    %221 = vector.broadcast %219 : vector<1x224xf32> to vector<3x224xf32>
    %222 = arith.mulf %220, %221 : vector<3x224xf32>
    %223 = arith.addf %216, %222 : vector<3x224xf32>
    %224 = vector.extract_strided_slice %38 {offsets = [0, 29], sizes = [3, 1], strides = [1, 1]} : vector<3x37xf32> to vector<3x1xf32>
    %225 = vector.extract_strided_slice %217 {offsets = [1, 0], sizes = [1, 224], strides = [1, 1]} : vector<4x224xf32> to vector<1x224xf32>
    %226 = vector.broadcast %224 : vector<3x1xf32> to vector<3x224xf32>
    %227 = vector.broadcast %225 : vector<1x224xf32> to vector<3x224xf32>
    %228 = arith.mulf %226, %227 : vector<3x224xf32>
    %229 = arith.addf %223, %228 : vector<3x224xf32>
    %230 = vector.extract_strided_slice %38 {offsets = [0, 30], sizes = [3, 1], strides = [1, 1]} : vector<3x37xf32> to vector<3x1xf32>
    %231 = vector.extract_strided_slice %217 {offsets = [2, 0], sizes = [1, 224], strides = [1, 1]} : vector<4x224xf32> to vector<1x224xf32>
    %232 = vector.broadcast %230 : vector<3x1xf32> to vector<3x224xf32>
    %233 = vector.broadcast %231 : vector<1x224xf32> to vector<3x224xf32>
    %234 = arith.mulf %232, %233 : vector<3x224xf32>
    %235 = arith.addf %229, %234 : vector<3x224xf32>
    %236 = vector.extract_strided_slice %38 {offsets = [0, 31], sizes = [3, 1], strides = [1, 1]} : vector<3x37xf32> to vector<3x1xf32>
    %237 = vector.extract_strided_slice %217 {offsets = [3, 0], sizes = [1, 224], strides = [1, 1]} : vector<4x224xf32> to vector<1x224xf32>
    %238 = vector.broadcast %236 : vector<3x1xf32> to vector<3x224xf32>
    %239 = vector.broadcast %237 : vector<1x224xf32> to vector<3x224xf32>
    %240 = arith.mulf %238, %239 : vector<3x224xf32>
    %241 = arith.addf %235, %240 : vector<3x224xf32>
    %c0_49 = arith.constant 0 : index
    %c34_50 = arith.constant 34 : index
    %242 = vector.load %arg4[%c0_49, %c34_50] : memref<4x258xf32, #tpu.memory_space<vmem>>, vector<4x224xf32>
    %243 = vector.extract_strided_slice %38 {offsets = [0, 32], sizes = [3, 1], strides = [1, 1]} : vector<3x37xf32> to vector<3x1xf32>
    %244 = vector.extract_strided_slice %242 {offsets = [0, 0], sizes = [1, 224], strides = [1, 1]} : vector<4x224xf32> to vector<1x224xf32>
    %245 = vector.broadcast %243 : vector<3x1xf32> to vector<3x224xf32>
    %246 = vector.broadcast %244 : vector<1x224xf32> to vector<3x224xf32>
    %247 = arith.mulf %245, %246 : vector<3x224xf32>
    %248 = arith.addf %241, %247 : vector<3x224xf32>
    %249 = vector.extract_strided_slice %38 {offsets = [0, 33], sizes = [3, 1], strides = [1, 1]} : vector<3x37xf32> to vector<3x1xf32>
    %250 = vector.extract_strided_slice %242 {offsets = [1, 0], sizes = [1, 224], strides = [1, 1]} : vector<4x224xf32> to vector<1x224xf32>
    %251 = vector.broadcast %249 : vector<3x1xf32> to vector<3x224xf32>
    %252 = vector.broadcast %250 : vector<1x224xf32> to vector<3x224xf32>
    %253 = arith.mulf %251, %252 : vector<3x224xf32>
    %254 = arith.addf %248, %253 : vector<3x224xf32>
    %255 = vector.extract_strided_slice %38 {offsets = [0, 34], sizes = [3, 1], strides = [1, 1]} : vector<3x37xf32> to vector<3x1xf32>
    %256 = vector.extract_strided_slice %242 {offsets = [2, 0], sizes = [1, 224], strides = [1, 1]} : vector<4x224xf32> to vector<1x224xf32>
    %257 = vector.broadcast %255 : vector<3x1xf32> to vector<3x224xf32>
    %258 = vector.broadcast %256 : vector<1x224xf32> to vector<3x224xf32>
    %259 = arith.mulf %257, %258 : vector<3x224xf32>
    %260 = arith.addf %254, %259 : vector<3x224xf32>
    %261 = vector.extract_strided_slice %38 {offsets = [0, 35], sizes = [3, 1], strides = [1, 1]} : vector<3x37xf32> to vector<3x1xf32>
    %262 = vector.extract_strided_slice %242 {offsets = [3, 0], sizes = [1, 224], strides = [1, 1]} : vector<4x224xf32> to vector<1x224xf32>
    %263 = vector.broadcast %261 : vector<3x1xf32> to vector<3x224xf32>
    %264 = vector.broadcast %262 : vector<1x224xf32> to vector<3x224xf32>
    %265 = arith.mulf %263, %264 : vector<3x224xf32>
    %266 = arith.addf %260, %265 : vector<3x224xf32>
    %267 = arith.negf %266 : vector<3x224xf32>
    %268 = math.exp %267 : vector<3x224xf32>
    %cst_51 = arith.constant 1.000000e+00 : f32
    %269 = vector.broadcast %cst_51 : f32 to vector<3x224xf32>
    %270 = arith.addf %269, %268 : vector<3x224xf32>
    %271 = arith.divf %269, %270 : vector<3x224xf32>
    %272 = vector.extract_strided_slice %271 {offsets = [0, 0], sizes = [3, 14], strides = [1, 1]} : vector<3x224xf32> to vector<3x14xf32>
    %c0_52 = arith.constant 0 : index
    %c0_53 = arith.constant 0 : index
    %c0_54 = arith.constant 0 : index
    %273 = vector.load %arg3[%c0_52, %c0_53, %c0_54] : memref<1x3x196xf32, #tpu.memory_space<vmem>>, vector<1x3x14xf32>
    %274 = vector.shape_cast %273 : vector<1x3x14xf32> to vector<3x14xf32>
    %275 = vector.shape_cast %272 : vector<3x14xf32> to vector<1x3x14xf32>
    tpu.vector_store %arg3[%c0_52, %c0_53, %c0_54], %275 {strides = array<i32>} : memref<1x3x196xf32, #tpu.memory_space<vmem>>, vector<1x3x14xf32>,
    %276 = vector.extract_strided_slice %271 {offsets = [0, 16], sizes = [3, 14], strides = [1, 1]} : vector<3x224xf32> to vector<3x14xf32>
    %c0_55 = arith.constant 0 : index
    %c0_56 = arith.constant 0 : index
    %c14 = arith.constant 14 : index
    %277 = vector.load %arg3[%c0_55, %c0_56, %c14] : memref<1x3x196xf32, #tpu.memory_space<vmem>>, vector<1x3x14xf32>
    %278 = vector.shape_cast %277 : vector<1x3x14xf32> to vector<3x14xf32>
    %279 = vector.shape_cast %276 : vector<3x14xf32> to vector<1x3x14xf32>
    tpu.vector_store %arg3[%c0_55, %c0_56, %c14], %279 {strides = array<i32>} : memref<1x3x196xf32, #tpu.memory_space<vmem>>, vector<1x3x14xf32>,
    %280 = vector.extract_strided_slice %271 {offsets = [0, 32], sizes = [3, 14], strides = [1, 1]} : vector<3x224xf32> to vector<3x14xf32>
    %c0_57 = arith.constant 0 : index
    %c0_58 = arith.constant 0 : index
    %c28 = arith.constant 28 : index
    %281 = vector.load %arg3[%c0_57, %c0_58, %c28] : memref<1x3x196xf32, #tpu.memory_space<vmem>>, vector<1x3x14xf32>
    %282 = vector.shape_cast %281 : vector<1x3x14xf32> to vector<3x14xf32>
    %283 = vector.shape_cast %280 : vector<3x14xf32> to vector<1x3x14xf32>
    tpu.vector_store %arg3[%c0_57, %c0_58, %c28], %283 {strides = array<i32>} : memref<1x3x196xf32, #tpu.memory_space<vmem>>, vector<1x3x14xf32>,
    %284 = vector.extract_strided_slice %271 {offsets = [0, 48], sizes = [3, 14], strides = [1, 1]} : vector<3x224xf32> to vector<3x14xf32>
    %c0_59 = arith.constant 0 : index
    %c0_60 = arith.constant 0 : index
    %c42 = arith.constant 42 : index
    %285 = vector.load %arg3[%c0_59, %c0_60, %c42] : memref<1x3x196xf32, #tpu.memory_space<vmem>>, vector<1x3x14xf32>
    %286 = vector.shape_cast %285 : vector<1x3x14xf32> to vector<3x14xf32>
    %287 = vector.shape_cast %284 : vector<3x14xf32> to vector<1x3x14xf32>
    tpu.vector_store %arg3[%c0_59, %c0_60, %c42], %287 {strides = array<i32>} : memref<1x3x196xf32, #tpu.memory_space<vmem>>, vector<1x3x14xf32>,
    %288 = vector.extract_strided_slice %271 {offsets = [0, 64], sizes = [3, 14], strides = [1, 1]} : vector<3x224xf32> to vector<3x14xf32>
    %c0_61 = arith.constant 0 : index
    %c0_62 = arith.constant 0 : index
    %c56 = arith.constant 56 : index
    %289 = vector.load %arg3[%c0_61, %c0_62, %c56] : memref<1x3x196xf32, #tpu.memory_space<vmem>>, vector<1x3x14xf32>
    %290 = vector.shape_cast %289 : vector<1x3x14xf32> to vector<3x14xf32>
    %291 = vector.shape_cast %288 : vector<3x14xf32> to vector<1x3x14xf32>
    tpu.vector_store %arg3[%c0_61, %c0_62, %c56], %291 {strides = array<i32>} : memref<1x3x196xf32, #tpu.memory_space<vmem>>, vector<1x3x14xf32>,
    %292 = vector.extract_strided_slice %271 {offsets = [0, 80], sizes = [3, 14], strides = [1, 1]} : vector<3x224xf32> to vector<3x14xf32>
    %c0_63 = arith.constant 0 : index
    %c0_64 = arith.constant 0 : index
    %c70 = arith.constant 70 : index
    %293 = vector.load %arg3[%c0_63, %c0_64, %c70] : memref<1x3x196xf32, #tpu.memory_space<vmem>>, vector<1x3x14xf32>
    %294 = vector.shape_cast %293 : vector<1x3x14xf32> to vector<3x14xf32>
    %295 = vector.shape_cast %292 : vector<3x14xf32> to vector<1x3x14xf32>
    tpu.vector_store %arg3[%c0_63, %c0_64, %c70], %295 {strides = array<i32>} : memref<1x3x196xf32, #tpu.memory_space<vmem>>, vector<1x3x14xf32>,
    %296 = vector.extract_strided_slice %271 {offsets = [0, 96], sizes = [3, 14], strides = [1, 1]} : vector<3x224xf32> to vector<3x14xf32>
    %c0_65 = arith.constant 0 : index
    %c0_66 = arith.constant 0 : index
    %c84_67 = arith.constant 84 : index
    %297 = vector.load %arg3[%c0_65, %c0_66, %c84_67] : memref<1x3x196xf32, #tpu.memory_space<vmem>>, vector<1x3x14xf32>
    %298 = vector.shape_cast %297 : vector<1x3x14xf32> to vector<3x14xf32>
    %299 = vector.shape_cast %296 : vector<3x14xf32> to vector<1x3x14xf32>
    tpu.vector_store %arg3[%c0_65, %c0_66, %c84_67], %299 {strides = array<i32>} : memref<1x3x196xf32, #tpu.memory_space<vmem>>, vector<1x3x14xf32>,
    %300 = vector.extract_strided_slice %271 {offsets = [0, 112], sizes = [3, 14], strides = [1, 1]} : vector<3x224xf32> to vector<3x14xf32>
    %c0_68 = arith.constant 0 : index
    %c0_69 = arith.constant 0 : index
    %c98_70 = arith.constant 98 : index
    %301 = vector.load %arg3[%c0_68, %c0_69, %c98_70] : memref<1x3x196xf32, #tpu.memory_space<vmem>>, vector<1x3x14xf32>
    %302 = vector.shape_cast %301 : vector<1x3x14xf32> to vector<3x14xf32>
    %303 = vector.shape_cast %300 : vector<3x14xf32> to vector<1x3x14xf32>
    tpu.vector_store %arg3[%c0_68, %c0_69, %c98_70], %303 {strides = array<i32>} : memref<1x3x196xf32, #tpu.memory_space<vmem>>, vector<1x3x14xf32>,
    %304 = vector.extract_strided_slice %271 {offsets = [0, 128], sizes = [3, 14], strides = [1, 1]} : vector<3x224xf32> to vector<3x14xf32>
    %c0_71 = arith.constant 0 : index
    %c0_72 = arith.constant 0 : index
    %c112 = arith.constant 112 : index
    %305 = vector.load %arg3[%c0_71, %c0_72, %c112] : memref<1x3x196xf32, #tpu.memory_space<vmem>>, vector<1x3x14xf32>
    %306 = vector.shape_cast %305 : vector<1x3x14xf32> to vector<3x14xf32>
    %307 = vector.shape_cast %304 : vector<3x14xf32> to vector<1x3x14xf32>
    tpu.vector_store %arg3[%c0_71, %c0_72, %c112], %307 {strides = array<i32>} : memref<1x3x196xf32, #tpu.memory_space<vmem>>, vector<1x3x14xf32>,
    %308 = vector.extract_strided_slice %271 {offsets = [0, 144], sizes = [3, 14], strides = [1, 1]} : vector<3x224xf32> to vector<3x14xf32>
    %c0_73 = arith.constant 0 : index
    %c0_74 = arith.constant 0 : index
    %c126 = arith.constant 126 : index
    %309 = vector.load %arg3[%c0_73, %c0_74, %c126] : memref<1x3x196xf32, #tpu.memory_space<vmem>>, vector<1x3x14xf32>
    %310 = vector.shape_cast %309 : vector<1x3x14xf32> to vector<3x14xf32>
    %311 = vector.shape_cast %308 : vector<3x14xf32> to vector<1x3x14xf32>
    tpu.vector_store %arg3[%c0_73, %c0_74, %c126], %311 {strides = array<i32>} : memref<1x3x196xf32, #tpu.memory_space<vmem>>, vector<1x3x14xf32>,
    %312 = vector.extract_strided_slice %271 {offsets = [0, 160], sizes = [3, 14], strides = [1, 1]} : vector<3x224xf32> to vector<3x14xf32>
    %c0_75 = arith.constant 0 : index
    %c0_76 = arith.constant 0 : index
    %c140 = arith.constant 140 : index
    %313 = vector.load %arg3[%c0_75, %c0_76, %c140] : memref<1x3x196xf32, #tpu.memory_space<vmem>>, vector<1x3x14xf32>
    %314 = vector.shape_cast %313 : vector<1x3x14xf32> to vector<3x14xf32>
    %315 = vector.shape_cast %312 : vector<3x14xf32> to vector<1x3x14xf32>
    tpu.vector_store %arg3[%c0_75, %c0_76, %c140], %315 {strides = array<i32>} : memref<1x3x196xf32, #tpu.memory_space<vmem>>, vector<1x3x14xf32>,
    %316 = vector.extract_strided_slice %271 {offsets = [0, 176], sizes = [3, 14], strides = [1, 1]} : vector<3x224xf32> to vector<3x14xf32>
    %c0_77 = arith.constant 0 : index
    %c0_78 = arith.constant 0 : index
    %c154 = arith.constant 154 : index
    %317 = vector.load %arg3[%c0_77, %c0_78, %c154] : memref<1x3x196xf32, #tpu.memory_space<vmem>>, vector<1x3x14xf32>
    %318 = vector.shape_cast %317 : vector<1x3x14xf32> to vector<3x14xf32>
    %319 = vector.shape_cast %316 : vector<3x14xf32> to vector<1x3x14xf32>
    tpu.vector_store %arg3[%c0_77, %c0_78, %c154], %319 {strides = array<i32>} : memref<1x3x196xf32, #tpu.memory_space<vmem>>, vector<1x3x14xf32>,
    %320 = vector.extract_strided_slice %271 {offsets = [0, 192], sizes = [3, 14], strides = [1, 1]} : vector<3x224xf32> to vector<3x14xf32>
    %c0_79 = arith.constant 0 : index
    %c0_80 = arith.constant 0 : index
    %c168 = arith.constant 168 : index
    %321 = vector.load %arg3[%c0_79, %c0_80, %c168] : memref<1x3x196xf32, #tpu.memory_space<vmem>>, vector<1x3x14xf32>
    %322 = vector.shape_cast %321 : vector<1x3x14xf32> to vector<3x14xf32>
    %323 = vector.shape_cast %320 : vector<3x14xf32> to vector<1x3x14xf32>
    tpu.vector_store %arg3[%c0_79, %c0_80, %c168], %323 {strides = array<i32>} : memref<1x3x196xf32, #tpu.memory_space<vmem>>, vector<1x3x14xf32>,
    %324 = vector.extract_strided_slice %271 {offsets = [0, 208], sizes = [3, 14], strides = [1, 1]} : vector<3x224xf32> to vector<3x14xf32>
    %c0_81 = arith.constant 0 : index
    %c0_82 = arith.constant 0 : index
    %c182 = arith.constant 182 : index
    %325 = vector.load %arg3[%c0_81, %c0_82, %c182] : memref<1x3x196xf32, #tpu.memory_space<vmem>>, vector<1x3x14xf32>
    %326 = vector.shape_cast %325 : vector<1x3x14xf32> to vector<3x14xf32>
    %327 = vector.shape_cast %324 : vector<3x14xf32> to vector<1x3x14xf32>
    tpu.vector_store %arg3[%c0_81, %c0_82, %c182], %327 {strides = array<i32>} : memref<1x3x196xf32, #tpu.memory_space<vmem>>, vector<1x3x14xf32>,
    return
  }
  func.func @transform_0(%arg0: i32) -> (i32, i32, i32) {
    %c0_i32 = arith.constant 0 : i32
    %c0_i32_0 = arith.constant 0 : i32
    %c0_i32_1 = arith.constant 0 : i32
    return %arg0, %c0_i32, %c0_i32_0 : i32, i32, i32
  }
  func.func @transform_1(%arg0: i32) -> (i32, i32) {
    %c0_i32 = arith.constant 0 : i32
    %c0_i32_0 = arith.constant 0 : i32
    %c0_i32_1 = arith.constant 0 : i32
    return %c0_i32, %c0_i32_0 : i32, i32
  }
  func.func @transform_2(%arg0: i32) -> (i32, i32, i32) {
    %c0_i32 = arith.constant 0 : i32
    %c0_i32_0 = arith.constant 0 : i32
    %c0_i32_1 = arith.constant 0 : i32
    return %arg0, %c0_i32, %c0_i32_0 : i32, i32, i32
  }
}

</mosaic_0001>

<llo_original>
// kernel: conv_transpose2d_sigmoid.1
$region0: #{conv_transpose2d_sigmoid.1}
  #allocation0 [shape = 'u32[]', space=smem, size = 0x4, offset = 0x4, fixed_abs, tag = 'smem constant byte address 0x4 - core index']
  #allocation1 [shape = 'u32[144,128]{1,0:T(1,128)}', space=vmem, size = 0x12000, scoped, tag = 'internal scratch']
  #allocation2 [shape = 'f32[4,258]{1,0:T(4,128)}', space=vmem, size = 0x1800, scoped, tag = 'scratch operand']
  %s0 = inlined_call_operand.vmem [shape: f32[2,4,144], index: 0, kind: input, shape index: {}]
  %s1 = inlined_call_operand.vmem [shape: f32[3,37], index: 1, kind: input, shape index: {}]
  %s2 = inlined_call_operand.vmem [shape: f32[2,3,196], index: 2, kind: output, shape index: {}]
  %s3 = sld [smem:[#allocation0]]
  $region41: #{conv_transpose2d_sigmoid.1} parent=0
    _
  %s5 = ssub.s32 1, %s3
  %s6 = scalar_select 0, %s5, %s3
  loop: start=0, step=1, limit=4
  $region2: #{conv_transpose2d_sigmoid.1} parent=0 // loop_pre_header
    _
  $region3: #{conv_transpose2d_sigmoid.1} parent=0 // loop_header
    %s8 = sphi 0, %s12
    %p9 = scmp.ge.s32.totalorder %s8, 4
    %s18 = sphi 0, %s20
    %s21 = sphi 0, %s18
    %s22 = sphi 0, %s21
    %s38 = sphi 0, %s22
    %s42 = sphi 0, %s42
    %s44 = sphi 0, %s42
    %s45 = sphi 0, %s44
    %s59 = sphi 0, %s45
    %s65 = sphi 0, %s67
    %s68 = sphi 0, %s65
    %s69 = sphi 0, %s68
    %s85 = sphi 0, %s69
  $region4: #{conv_transpose2d_sigmoid.1} parent=0 // loop_header_branch
    %11 = sbr.rel (%p9) target = $region8
  $region5: #{conv_transpose2d_sigmoid.1} parent=0 // loop_body
    %s13 = ssub.s32 %s8, 1
    %s14 = ssub.s32 %s8, 2
    %s15 = sadd.s32 %s8, 1
    %s16 = ssub.s32 %s8, %s15
    %p17 = scmp.eq.s32.totalorder %s16, 0
    %s19 = sadd.s32 %s18, 1
    %s20 = scalar_select %p17, %s18, %s19
    %p23 = pneg %p17
    %p24 = scmp.eq.s32.totalorder %s8, 1
    %p25 = por %p23, %p24
    %p26 = scmp.ne.s32.totalorder %s18, %s21
    %p27 = scmp.eq.s32.totalorder %s8, 0
    %p28 = por %p26, %p27
    %p29 = scmp.ne.s32.totalorder %s18, %s21
    %p30 = scmp.eq.s32.totalorder %s13, 1
    %p31 = por %p29, %p30
    %p32 = scmp.ne.s32.totalorder %s21, %s22
    %p33 = scmp.eq.s32.totalorder %s13, 0
    %p34 = por %p32, %p33
    %p35 = scmp.ne.s32.totalorder %s21, %s22
    %p36 = scmp.eq.s32.totalorder %s14, 1
    %p37 = por %p35, %p36
    %p39 = scmp.ne.s32.totalorder %s22, %s38
    %p40 = scmp.eq.s32.totalorder %s14, 0
    %p41 = por %p39, %p40
    %s43 = sadd.s32 %s42, 1
    %p46 = scmp.eq.s32.totalorder %s8, 1
    %p47 = scmp.ne.s32.totalorder %s42, %s44
    %p48 = scmp.eq.s32.totalorder %s8, 0
    %p49 = por %p47, %p48
    %p50 = scmp.ne.s32.totalorder %s42, %s44
    %p51 = scmp.eq.s32.totalorder %s13, 1
    %p52 = por %p50, %p51
    %p53 = scmp.ne.s32.totalorder %s44, %s45
    %p54 = scmp.eq.s32.totalorder %s13, 0
    %p55 = por %p53, %p54
    %p56 = scmp.ne.s32.totalorder %s44, %s45
    %p57 = scmp.eq.s32.totalorder %s14, 1
    %p58 = por %p56, %p57
    %p60 = scmp.ne.s32.totalorder %s45, %s59
    %p61 = scmp.eq.s32.totalorder %s14, 0
    %p62 = por %p60, %p61
    %s63 = ssub.s32 %s8, %s15
    %p64 = scmp.eq.s32.totalorder %s63, 0
    %s66 = sadd.s32 %s65, 1
    %s67 = scalar_select %p64, %s65, %s66
    %p70 = pneg %p64
    %p71 = scmp.eq.s32.totalorder %s8, 1
    %p72 = por %p70, %p71
    %p73 = scmp.ne.s32.totalorder %s65, %s68
    %p74 = scmp.eq.s32.totalorder %s8, 0
    %p75 = por %p73, %p74
    %p76 = scmp.ne.s32.totalorder %s65, %s68
    %p77 = scmp.eq.s32.totalorder %s13, 1
    %p78 = por %p76, %p77
    %p79 = scmp.ne.s32.totalorder %s68, %s69
    %p80 = scmp.eq.s32.totalorder %s13, 0
    %p81 = por %p79, %p80
    %p82 = scmp.ne.s32.totalorder %s68, %s69
    %p83 = scmp.eq.s32.totalorder %s14, 1
    %p84 = por %p82, %p83
    %p86 = scmp.ne.s32.totalorder %s69, %s85
    %p87 = scmp.eq.s32.totalorder %s14, 0
    %p88 = por %p86, %p87
    %p89 = scmp.le.s32.totalorder 1, %s8
    %p90 = scmp.lt.s32.totalorder %s8, 3
    %p91 = pnand %p89, %p90
    %p92 = pneg %p91
    // Predicated region
    $region9: #{conv_transpose2d_sigmoid.1} parent=5 // pred_check
      _
    $region10: #{conv_transpose2d_sigmoid.1} parent=5 // pred_check_branch
      %94 = sbr.rel (%p91) target = $region12
    $region11: #{conv_transpose2d_sigmoid.1} parent=5 // pred_region
      %s95 = ssub.s32 %s8, 1
      // Predicated region
      $region13: #{conv_transpose2d_sigmoid.1} parent=11 // pred_check
        %p96 = pneg %p55
      $region14: #{conv_transpose2d_sigmoid.1} parent=11 // pred_check_branch
        %98 = sbr.rel (%p96) target = $region16
      $region15: #{conv_transpose2d_sigmoid.1} parent=11 // pred_region
        _
      $region16: #{conv_transpose2d_sigmoid.1} parent=11 // pred_fallthru
        _
    $region12: #{conv_transpose2d_sigmoid.1} parent=5 // pred_fallthru
      _
    %p99 = scmp.lt.s32.totalorder %s8, 2
    // Predicated region
    $region17: #{conv_transpose2d_sigmoid.1} parent=5 // pred_check
      %p100 = pneg %p99
    $region18: #{conv_transpose2d_sigmoid.1} parent=5 // pred_check_branch
      %102 = sbr.rel (%p100) target = $region20
    $region19: #{conv_transpose2d_sigmoid.1} parent=5 // pred_region
      // Predicated region
      $region21: #{conv_transpose2d_sigmoid.1} parent=19 // pred_check
        %p103 = pneg %p28
      $region22: #{conv_transpose2d_sigmoid.1} parent=19 // pred_check_branch
        %105 = sbr.rel (%p103) target = $region24
      $region23: #{conv_transpose2d_sigmoid.1} parent=19 // pred_region
        %p106 = scmp.lt.s32.totalorder %s8, 1
        %s107 = scalar_select %p106, %s8, 1
        %s108 = smul.addr %s107, 2
        %s109 = smul.addr %s108, 4
        %s110 = scalar_lea.vmem %s0, %s109
      $region24: #{conv_transpose2d_sigmoid.1} parent=19 // pred_fallthru
        _
    $region20: #{conv_transpose2d_sigmoid.1} parent=5 // pred_fallthru
      _
    %p111 = scmp.le.s32.totalorder 1, %s8
    %p112 = scmp.lt.s32.totalorder %s8, 3
    %p113 = pnand %p111, %p112
    %p114 = pneg %p113
    // Predicated region
    $region25: #{conv_transpose2d_sigmoid.1} parent=5 // pred_check
      _
    $region26: #{conv_transpose2d_sigmoid.1} parent=5 // pred_check_branch
      %116 = sbr.rel (%p113) target = $region28
    $region27: #{conv_transpose2d_sigmoid.1} parent=5 // pred_region
      %s117 = ssub.s32 %s8, 1
      %p118 = scmp.lt.s32.totalorder %s13, 1
      %s119 = scalar_select %p118, %s13, 1
      %s120 = smul.addr %s119, 2
      %s121 = smul.addr %s120, 4
      %s122 = scalar_lea.vmem %s0, %s121
      %p123 = pneg %p34
      %p124 = pneg %p31
      %p125 = pneg %p55
      %p126 = pneg %p52
      %p127 = pneg %p81
      %p128 = pneg %p78
      %p129 = scmp.lt.s32.totalorder %s13, 1
      %s130 = scalar_select %p129, %s13, 1
      %s131 = smul.addr %s130, 2
      %s132 = smul.addr %s131, 4
      %s133 = scalar_lea.vmem %s2, %s132
      %p134 = scmp.lt.s32.totalorder %s13, 1
      %s135 = scalar_select %p134, %s13, 1
      %s136 = smul.addr %s135, 2
      %s137 = smul.addr %s136, 4
      %s138 = scalar_lea.vmem %s0, %s137
      %p139 = scmp.lt.s32.totalorder %s13, 1
      %s140 = scalar_select %p139, %s13, 1
      %s141 = smul.addr %s140, 2
      %s142 = smul.addr %s141, 4
      %s143 = scalar_lea.vmem %s2, %s142
      %144 = vst [vmem:[#allocation2] sm:$0xff] 0.0
      %vm145 = vcmask 11264
      %146 = vst.msk [vmem:[#allocation2 + $0x8] sm:$0xf] %vm145, 0.0
      %v147 = vld [vmem:[%s138] sm:$0xf]
      %149 = vrot.lane.b32.xlu0 %v147, 34
      %v150 = vpop.permute.xlu0 %149
      %vm152 = vcmask 371984
      %153 = vst.msk [vmem:[#allocation2] sm:$0xf] %vm152, %v150
      %v154 = vld [vmem:[%s138] sm:$0xf]
      %156 = vrot.lane.b32.xlu0 %v154, 38
      %v157 = vpop.permute.xlu0 %156
      %vm159 = vcmask 503184
      %160 = vst.msk [vmem:[#allocation2] sm:$0xf] %vm159, %v157
      %v161 = vld [vmem:[%s138] sm:$0xf]
      %163 = vrot.lane.b32.xlu0 %v161, 42
      %v164 = vpop.permute.xlu0 %163
      %vm166 = vcmask 634384
      %167 = vst.msk [vmem:[#allocation2] sm:$0xf] %vm166, %v164
      %v168 = vld [vmem:[%s138] sm:$0xf]
      %170 = vrot.lane.b32.xlu0 %v168, 46
      %v171 = vpop.permute.xlu0 %170
      %vm173 = vcmask 765584
      %174 = vst.msk [vmem:[#allocation2] sm:$0xf] %vm173, %v171
      %v175 = vld [vmem:[%s138] sm:$0xf]
      %177 = vrot.lane.b32.xlu0 %v175, 50
      %v178 = vpop.permute.xlu0 %177
      %vm180 = vcmask 896784
      %181 = vst.msk [vmem:[#allocation2] sm:$0xf] %vm180, %v178
      %v182 = vld [vmem:[%s138] sm:$0xf]
      %184 = vrot.lane.b32.xlu0 %v182, 54
      %v185 = vpop.permute.xlu0 %184
      %vm187 = vcmask 1027984
      %188 = vst.msk [vmem:[#allocation2] sm:$0xf] %vm187, %v185
      %v189 = vld [vmem:[%s138] sm:$0xf]
      %191 = vrot.lane.b32.xlu0 %v189, 58
      %v192 = vpop.permute.xlu0 %191
      %vm194 = vcmask 109584
      %195 = vst.msk [vmem:[#allocation2 + $0x4] sm:$0xf] %vm194, %v192
      %v196 = vld [vmem:[%s138] sm:$0xf]
      %198 = vrot.lane.b32.xlu0 %v196, 62
      %v199 = vpop.permute.xlu0 %198
      %vm201 = vcmask 240784
      %202 = vst.msk [vmem:[#allocation2 + $0x4] sm:$0xf] %vm201, %v199
      %v203 = vld [vmem:[%s138] sm:$0xf]
      %205 = vrot.lane.b32.xlu0 %v203, 66
      %v206 = vpop.permute.xlu0 %205
      %208 = vst.msk [vmem:[#allocation2 + $0x4] sm:$0xf] %vm152, %v206
      %v209 = vld [vmem:[%s138] sm:$0xf]
      %211 = vrot.lane.b32.xlu0 %v209, 70
      %v212 = vpop.permute.xlu0 %211
      %214 = vst.msk [vmem:[#allocation2 + $0x4] sm:$0xf] %vm159, %v212
      %v215 = vld [vmem:[%s138] sm:$0xff]
      %217 = vrot.lane.b32.xlu0 %v215, 74
      %v218 = vpop.permute.xlu0 %217
      %v219 = vrot.slane %v218, 4
      %vm220 = vcmask 605184
      %v221 = vsel %vm220, %v218, %v219
      %223 = vst.msk [vmem:[#allocation2 + $0x4] sm:$0xf] %vm166, %v221
      %v224 = vld [vmem:[%s138 + $0x4] sm:$0xf]
      %226 = vrot.lane.b32.xlu0 %v224, 78
      %v227 = vpop.permute.xlu0 %226
      %229 = vst.msk [vmem:[#allocation2 + $0x4] sm:$0xf] %vm173, %v227
      %v230 = vld [vmem:[%s1] sm:$0x7]
      %232 = vset.pattern.permute.xlu0 36
      %233 = vperm.xlu0 %232, %v230
      %v234 = vpop.permute.xlu0 %233
      %v236 = vld [vmem:[#allocation2] sm:$0xff]
      %237 = vset.pattern.permute.xlu0 0
      %238 = vperm.xlu0 %237, %v230
      %v239 = vpop.permute.xlu0 %238
      %v242 = vlaneseq
      %v243 = vshrl.u32 %v242, 7
      %v244 = vsub.s32 0, %v243
      %v245 = vrot.slane %v236, %v244
      %v246 = vlaneseq
      %v247 = vshrl.u32 %v246, 7
      %v248 = vsub.s32 4, %v247
      %v249 = vrot.slane %v236, %v248
      %v252 = vlaneseq
      %v253 = vshrl.u32 %v252, 7
      %v254 = vsub.s32 0, %v253
      %v255 = vrot.slane %v245, %v254
      %v256 = vlaneseq
      %v257 = vshrl.u32 %v256, 7
      %v258 = vsub.s32 0, %v257
      %v259 = vrot.slane %v249, %v258
      %v260 = vmul.f32 %v239, %v255
      %v261 = vmul.f32 %v239, %v259
      %v262 = vadd.f32 %v234, %v260
      %v263 = vadd.f32 %v234, %v261
      %264 = vset.pattern.permute.xlu0 1
      %265 = vperm.xlu0 %264, %v230
      %v266 = vpop.permute.xlu0 %265
      %v268 = vlaneseq
      %v269 = vshrl.u32 %v268, 7
      %v270 = vsub.s32 1, %v269
      %v271 = vrot.slane %v236, %v270
      %v272 = vlaneseq
      %v273 = vshrl.u32 %v272, 7
      %v274 = vsub.s32 5, %v273
      %v275 = vrot.slane %v236, %v274
      %v278 = vlaneseq
      %v279 = vshrl.u32 %v278, 7
      %v280 = vsub.s32 1, %v279
      %v281 = vrot.slane %v271, %v280
      %v282 = vlaneseq
      %v283 = vshrl.u32 %v282, 7
      %v284 = vsub.s32 1, %v283
      %v285 = vrot.slane %v275, %v284
      %v286 = vmul.f32 %v266, %v281
      %v287 = vmul.f32 %v266, %v285
      %v288 = vadd.f32 %v262, %v286
      %v289 = vadd.f32 %v263, %v287
      %290 = vset.pattern.permute.xlu0 2
      %291 = vperm.xlu0 %290, %v230
      %v292 = vpop.permute.xlu0 %291
      %v294 = vlaneseq
      %v295 = vshrl.u32 %v294, 7
      %v296 = vsub.s32 2, %v295
      %v297 = vrot.slane %v236, %v296
      %v298 = vlaneseq
      %v299 = vshrl.u32 %v298, 7
      %v300 = vsub.s32 6, %v299
      %v301 = vrot.slane %v236, %v300
      %v304 = vlaneseq
      %v305 = vshrl.u32 %v304, 7
      %v306 = vsub.s32 2, %v305
      %v307 = vrot.slane %v297, %v306
      %v308 = vlaneseq
      %v309 = vshrl.u32 %v308, 7
      %v310 = vsub.s32 2, %v309
      %v311 = vrot.slane %v301, %v310
      %v312 = vmul.f32 %v292, %v307
      %v313 = vmul.f32 %v292, %v311
      %v314 = vadd.f32 %v288, %v312
      %v315 = vadd.f32 %v289, %v313
      %316 = vset.pattern.permute.xlu0 3
      %317 = vperm.xlu0 %316, %v230
      %v318 = vpop.permute.xlu0 %317
      %v320 = vlaneseq
      %v321 = vshrl.u32 %v320, 7
      %v322 = vsub.s32 3, %v321
      %v323 = vrot.slane %v236, %v322
      %v324 = vlaneseq
      %v325 = vshrl.u32 %v324, 7
      %v326 = vsub.s32 7, %v325
      %v327 = vrot.slane %v236, %v326
      %v330 = vlaneseq
      %v331 = vshrl.u32 %v330, 7
      %v332 = vsub.s32 3, %v331
      %v333 = vrot.slane %v323, %v332
      %v334 = vlaneseq
      %v335 = vshrl.u32 %v334, 7
      %v336 = vsub.s32 3, %v335
      %v337 = vrot.slane %v327, %v336
      %v338 = vmul.f32 %v318, %v333
      %v339 = vmul.f32 %v318, %v337
      %v340 = vadd.f32 %v314, %v338
      %v341 = vadd.f32 %v315, %v339
      %342 = vset.pattern.permute.xlu0 4
      %343 = vperm.xlu0 %342, %v230
      %v344 = vpop.permute.xlu0 %343
      %v346 = vmul.f32 %v344, %v255
      %v347 = vmul.f32 %v344, %v259
      %350 = vrot.lane.b32.xlu0 %v346, 127
      %v351 = vpop.permute.xlu0 %350
      %352 = vrot.lane.b32.xlu0 %v347, 127
      %v353 = vpop.permute.xlu0 %352
      %vm354 = vcmask 1039360
      %v355 = vsel %vm354, %v351, %v353
      %v358 = vadd.f32 %v340, %v355
      %v359 = vadd.f32 %v341, %v353
      %360 = vset.pattern.permute.xlu0 5
      %361 = vperm.xlu0 %360, %v230
      %v362 = vpop.permute.xlu0 %361
      %v364 = vmul.f32 %v362, %v281
      %v365 = vmul.f32 %v362, %v285
      %368 = vrot.lane.b32.xlu0 %v364, 127
      %v369 = vpop.permute.xlu0 %368
      %370 = vrot.lane.b32.xlu0 %v365, 127
      %v371 = vpop.permute.xlu0 %370
      %v372 = vsel %vm354, %v369, %v371
      %v375 = vadd.f32 %v358, %v372
      %v376 = vadd.f32 %v359, %v371
      %377 = vset.pattern.permute.xlu0 6
      %378 = vperm.xlu0 %377, %v230
      %v379 = vpop.permute.xlu0 %378
      %v381 = vmul.f32 %v379, %v307
      %v382 = vmul.f32 %v379, %v311
      %385 = vrot.lane.b32.xlu0 %v381, 127
      %v386 = vpop.permute.xlu0 %385
      %387 = vrot.lane.b32.xlu0 %v382, 127
      %v388 = vpop.permute.xlu0 %387
      %v389 = vsel %vm354, %v386, %v388
      %v392 = vadd.f32 %v375, %v389
      %v393 = vadd.f32 %v376, %v388
      %394 = vset.pattern.permute.xlu0 7
      %395 = vperm.xlu0 %394, %v230
      %v396 = vpop.permute.xlu0 %395
      %v398 = vmul.f32 %v396, %v333
      %v399 = vmul.f32 %v396, %v337
      %402 = vrot.lane.b32.xlu0 %v398, 127
      %v403 = vpop.permute.xlu0 %402
      %404 = vrot.lane.b32.xlu0 %v399, 127
      %v405 = vpop.permute.xlu0 %404
      %v406 = vsel %vm354, %v403, %v405
      %v409 = vadd.f32 %v392, %v406
      %v410 = vadd.f32 %v393, %v405
      %411 = vset.pattern.permute.xlu0 8
      %412 = vperm.xlu0 %411, %v230
      %v413 = vpop.permute.xlu0 %412
      %v415 = vmul.f32 %v413, %v255
      %v416 = vmul.f32 %v413, %v259
      %419 = vrot.lane.b32.xlu0 %v415, 126
      %v420 = vpop.permute.xlu0 %419
      %421 = vrot.lane.b32.xlu0 %v416, 126
      %v422 = vpop.permute.xlu0 %421
      %vm423 = vcmask 1031168
      %v424 = vsel %vm423, %v420, %v422
      %v427 = vadd.f32 %v409, %v424
      %v428 = vadd.f32 %v410, %v422
      %429 = vset.pattern.permute.xlu0 9
      %430 = vperm.xlu0 %429, %v230
      %v431 = vpop.permute.xlu0 %430
      %v433 = vmul.f32 %v431, %v281
      %v434 = vmul.f32 %v431, %v285
      %437 = vrot.lane.b32.xlu0 %v433, 126
      %v438 = vpop.permute.xlu0 %437
      %439 = vrot.lane.b32.xlu0 %v434, 126
      %v440 = vpop.permute.xlu0 %439
      %v441 = vsel %vm423, %v438, %v440
      %v444 = vadd.f32 %v427, %v441
      %v445 = vadd.f32 %v428, %v440
      %446 = vset.pattern.permute.xlu0 10
      %447 = vperm.xlu0 %446, %v230
      %v448 = vpop.permute.xlu0 %447
      %v450 = vmul.f32 %v448, %v307
      %v451 = vmul.f32 %v448, %v311
      %454 = vrot.lane.b32.xlu0 %v450, 126
      %v455 = vpop.permute.xlu0 %454
      %456 = vrot.lane.b32.xlu0 %v451, 126
      %v457 = vpop.permute.xlu0 %456
      %v458 = vsel %vm423, %v455, %v457
      %v461 = vadd.f32 %v444, %v458
      %v462 = vadd.f32 %v445, %v457
      %463 = vset.pattern.permute.xlu0 11
      %464 = vperm.xlu0 %463, %v230
      %v465 = vpop.permute.xlu0 %464
      %v467 = vmul.f32 %v465, %v333
      %v468 = vmul.f32 %v465, %v337
      %471 = vrot.lane.b32.xlu0 %v467, 126
      %v472 = vpop.permute.xlu0 %471
      %473 = vrot.lane.b32.xlu0 %v468, 126
      %v474 = vpop.permute.xlu0 %473
      %v475 = vsel %vm423, %v472, %v474
      %v478 = vadd.f32 %v461, %v475
      %v479 = vadd.f32 %v462, %v474
      %480 = vset.pattern.permute.xlu0 12
      %481 = vperm.xlu0 %480, %v230
      %v482 = vpop.permute.xlu0 %481
      %v484 = vmul.f32 %v482, %v255
      %v485 = vmul.f32 %v482, %v259
      %488 = vrot.lane.b32.xlu0 %v484, 112
      %v489 = vpop.permute.xlu0 %488
      %490 = vrot.lane.b32.xlu0 %v485, 112
      %v491 = vpop.permute.xlu0 %490
      %vm492 = vcmask 916480
      %v493 = vsel %vm492, %v489, %v491
      %v496 = vadd.f32 %v478, %v493
      %v497 = vadd.f32 %v479, %v491
      %498 = vset.pattern.permute.xlu0 13
      %499 = vperm.xlu0 %498, %v230
      %v500 = vpop.permute.xlu0 %499
      %v502 = vmul.f32 %v500, %v281
      %v503 = vmul.f32 %v500, %v285
      %506 = vrot.lane.b32.xlu0 %v502, 112
      %v507 = vpop.permute.xlu0 %506
      %508 = vrot.lane.b32.xlu0 %v503, 112
      %v509 = vpop.permute.xlu0 %508
      %v510 = vsel %vm492, %v507, %v509
      %v513 = vadd.f32 %v496, %v510
      %v514 = vadd.f32 %v497, %v509
      %515 = vset.pattern.permute.xlu0 14
      %516 = vperm.xlu0 %515, %v230
      %v517 = vpop.permute.xlu0 %516
      %v519 = vmul.f32 %v517, %v307
      %v520 = vmul.f32 %v517, %v311
      %523 = vrot.lane.b32.xlu0 %v519, 112
      %v524 = vpop.permute.xlu0 %523
      %525 = vrot.lane.b32.xlu0 %v520, 112
      %v526 = vpop.permute.xlu0 %525
      %v527 = vsel %vm492, %v524, %v526
      %v530 = vadd.f32 %v513, %v527
      %v531 = vadd.f32 %v514, %v526
      %532 = vset.pattern.permute.xlu0 15
      %533 = vperm.xlu0 %532, %v230
      %v534 = vpop.permute.xlu0 %533
      %v536 = vmul.f32 %v534, %v333
      %v537 = vmul.f32 %v534, %v337
      %540 = vrot.lane.b32.xlu0 %v536, 112
      %v541 = vpop.permute.xlu0 %540
      %542 = vrot.lane.b32.xlu0 %v537, 112
      %v543 = vpop.permute.xlu0 %542
      %v544 = vsel %vm492, %v541, %v543
      %v547 = vadd.f32 %v530, %v544
      %v548 = vadd.f32 %v531, %v543
      %549 = vset.pattern.permute.xlu0 16
      %550 = vperm.xlu0 %549, %v230
      %v551 = vpop.permute.xlu0 %550
      %v553 = vmul.f32 %v551, %v255
      %v554 = vmul.f32 %v551, %v259
      %557 = vrot.lane.b32.xlu0 %v553, 111
      %v558 = vpop.permute.xlu0 %557
      %559 = vrot.lane.b32.xlu0 %v554, 111
      %v560 = vpop.permute.xlu0 %559
      %vm561 = vcmask 908288
      %v562 = vsel %vm561, %v558, %v560
      %v565 = vadd.f32 %v547, %v562
      %v566 = vadd.f32 %v548, %v560
      %567 = vset.pattern.permute.xlu0 17
      %568 = vperm.xlu0 %567, %v230
      %v569 = vpop.permute.xlu0 %568
      %v571 = vmul.f32 %v569, %v281
      %v572 = vmul.f32 %v569, %v285
      %575 = vrot.lane.b32.xlu0 %v571, 111
      %v576 = vpop.permute.xlu0 %575
      %577 = vrot.lane.b32.xlu0 %v572, 111
      %v578 = vpop.permute.xlu0 %577
      %v579 = vsel %vm561, %v576, %v578
      %v582 = vadd.f32 %v565, %v579
      %v583 = vadd.f32 %v566, %v578
      %584 = vset.pattern.permute.xlu0 18
      %585 = vperm.xlu0 %584, %v230
      %v586 = vpop.permute.xlu0 %585
      %v588 = vmul.f32 %v586, %v307
      %v589 = vmul.f32 %v586, %v311
      %592 = vrot.lane.b32.xlu0 %v588, 111
      %v593 = vpop.permute.xlu0 %592
      %594 = vrot.lane.b32.xlu0 %v589, 111
      %v595 = vpop.permute.xlu0 %594
      %v596 = vsel %vm561, %v593, %v595
      %v599 = vadd.f32 %v582, %v596
      %v600 = vadd.f32 %v583, %v595
      %601 = vset.pattern.permute.xlu0 19
      %602 = vperm.xlu0 %601, %v230
      %v603 = vpop.permute.xlu0 %602
      %v605 = vmul.f32 %v603, %v333
      %v606 = vmul.f32 %v603, %v337
      %609 = vrot.lane.b32.xlu0 %v605, 111
      %v610 = vpop.permute.xlu0 %609
      %611 = vrot.lane.b32.xlu0 %v606, 111
      %v612 = vpop.permute.xlu0 %611
      %v613 = vsel %vm561, %v610, %v612
      %v616 = vadd.f32 %v599, %v613
      %v617 = vadd.f32 %v600, %v612
      %618 = vset.pattern.permute.xlu0 20
      %619 = vperm.xlu0 %618, %v230
      %v620 = vpop.permute.xlu0 %619
      %v622 = vmul.f32 %v620, %v255
      %v623 = vmul.f32 %v620, %v259
      %626 = vrot.lane.b32.xlu0 %v622, 110
      %v627 = vpop.permute.xlu0 %626
      %628 = vrot.lane.b32.xlu0 %v623, 110
      %v629 = vpop.permute.xlu0 %628
      %vm630 = vcmask 900096
      %v631 = vsel %vm630, %v627, %v629
      %v634 = vadd.f32 %v616, %v631
      %v635 = vadd.f32 %v617, %v629
      %636 = vset.pattern.permute.xlu0 21
      %637 = vperm.xlu0 %636, %v230
      %v638 = vpop.permute.xlu0 %637
      %v640 = vmul.f32 %v638, %v281
      %v641 = vmul.f32 %v638, %v285
      %644 = vrot.lane.b32.xlu0 %v640, 110
      %v645 = vpop.permute.xlu0 %644
      %646 = vrot.lane.b32.xlu0 %v641, 110
      %v647 = vpop.permute.xlu0 %646
      %v648 = vsel %vm630, %v645, %v647
      %v651 = vadd.f32 %v634, %v648
      %v652 = vadd.f32 %v635, %v647
      %653 = vset.pattern.permute.xlu0 22
      %654 = vperm.xlu0 %653, %v230
      %v655 = vpop.permute.xlu0 %654
      %v657 = vmul.f32 %v655, %v307
      %v658 = vmul.f32 %v655, %v311
      %661 = vrot.lane.b32.xlu0 %v657, 110
      %v662 = vpop.permute.xlu0 %661
      %663 = vrot.lane.b32.xlu0 %v658, 110
      %v664 = vpop.permute.xlu0 %663
      %v665 = vsel %vm630, %v662, %v664
      %v668 = vadd.f32 %v651, %v665
      %v669 = vadd.f32 %v652, %v664
      %670 = vset.pattern.permute.xlu0 23
      %671 = vperm.xlu0 %670, %v230
      %v672 = vpop.permute.xlu0 %671
      %v674 = vmul.f32 %v672, %v333
      %v675 = vmul.f32 %v672, %v337
      %678 = vrot.lane.b32.xlu0 %v674, 110
      %v679 = vpop.permute.xlu0 %678
      %680 = vrot.lane.b32.xlu0 %v675, 110
      %v681 = vpop.permute.xlu0 %680
      %v682 = vsel %vm630, %v679, %v681
      %v685 = vadd.f32 %v668, %v682
      %v686 = vadd.f32 %v669, %v681
      %687 = vset.pattern.permute.xlu0 24
      %688 = vperm.xlu0 %687, %v230
      %v689 = vpop.permute.xlu0 %688
      %v691 = vmul.f32 %v689, %v255
      %v692 = vmul.f32 %v689, %v259
      %695 = vrot.lane.b32.xlu0 %v691, 96
      %v696 = vpop.permute.xlu0 %695
      %697 = vrot.lane.b32.xlu0 %v692, 96
      %v698 = vpop.permute.xlu0 %697
      %vm699 = vcmask 785408
      %v700 = vsel %vm699, %v696, %v698
      %v703 = vadd.f32 %v685, %v700
      %v704 = vadd.f32 %v686, %v698
      %705 = vset.pattern.permute.xlu0 25
      %706 = vperm.xlu0 %705, %v230
      %v707 = vpop.permute.xlu0 %706
      %v709 = vmul.f32 %v707, %v281
      %v710 = vmul.f32 %v707, %v285
      %713 = vrot.lane.b32.xlu0 %v709, 96
      %v714 = vpop.permute.xlu0 %713
      %715 = vrot.lane.b32.xlu0 %v710, 96
      %v716 = vpop.permute.xlu0 %715
      %v717 = vsel %vm699, %v714, %v716
      %v720 = vadd.f32 %v703, %v717
      %v721 = vadd.f32 %v704, %v716
      %722 = vset.pattern.permute.xlu0 26
      %723 = vperm.xlu0 %722, %v230
      %v724 = vpop.permute.xlu0 %723
      %v726 = vmul.f32 %v724, %v307
      %v727 = vmul.f32 %v724, %v311
      %730 = vrot.lane.b32.xlu0 %v726, 96
      %v731 = vpop.permute.xlu0 %730
      %732 = vrot.lane.b32.xlu0 %v727, 96
      %v733 = vpop.permute.xlu0 %732
      %v734 = vsel %vm699, %v731, %v733
      %v737 = vadd.f32 %v720, %v734
      %v738 = vadd.f32 %v721, %v733
      %739 = vset.pattern.permute.xlu0 27
      %740 = vperm.xlu0 %739, %v230
      %v741 = vpop.permute.xlu0 %740
      %v743 = vmul.f32 %v741, %v333
      %v744 = vmul.f32 %v741, %v337
      %747 = vrot.lane.b32.xlu0 %v743, 96
      %v748 = vpop.permute.xlu0 %747
      %749 = vrot.lane.b32.xlu0 %v744, 96
      %v750 = vpop.permute.xlu0 %749
      %v751 = vsel %vm699, %v748, %v750
      %v754 = vadd.f32 %v737, %v751
      %v755 = vadd.f32 %v738, %v750
      %v756 = vld [vmem:[#allocation2] sm:$0xff]
      %v757 = vld [vmem:[#allocation2 + $0x8] sm:$0xf]
      %758 = vset.pattern.permute.xlu0 28
      %759 = vperm.xlu0 %758, %v230
      %v760 = vpop.permute.xlu0 %759
      %v764 = vlaneseq
      %v765 = vshrl.u32 %v764, 7
      %v766 = vsub.s32 0, %v765
      %v767 = vrot.slane %v756, %v766
      %v768 = vlaneseq
      %v769 = vshrl.u32 %v768, 7
      %v770 = vsub.s32 4, %v769
      %v771 = vrot.slane %v756, %v770
      %v772 = vlaneseq
      %v773 = vshrl.u32 %v772, 7
      %v774 = vsub.s32 0, %v773
      %v775 = vrot.slane %v757, %v774
      %v779 = vlaneseq
      %v780 = vshrl.u32 %v779, 7
      %v781 = vsub.s32 0, %v780
      %v782 = vrot.slane %v767, %v781
      %v783 = vlaneseq
      %v784 = vshrl.u32 %v783, 7
      %v785 = vsub.s32 0, %v784
      %v786 = vrot.slane %v771, %v785
      %v787 = vlaneseq
      %v788 = vshrl.u32 %v787, 7
      %v789 = vsub.s32 0, %v788
      %v790 = vrot.slane %v775, %v789
      %v791 = vmul.f32 %v760, %v782
      %v792 = vmul.f32 %v760, %v786
      %v793 = vmul.f32 %v760, %v790
      %797 = vrot.lane.b32.xlu0 %v791, 95
      %v798 = vpop.permute.xlu0 %797
      %799 = vrot.lane.b32.xlu0 %v792, 95
      %v800 = vpop.permute.xlu0 %799
      %801 = vrot.lane.b32.xlu0 %v793, 95
      %v802 = vpop.permute.xlu0 %801
      %vm803 = vcmask 777216
      %v804 = vsel %vm803, %v798, %v800
      %v805 = vsel %vm803, %v800, %v802
      %v808 = vadd.f32 %v754, %v804
      %v809 = vadd.f32 %v755, %v805
      %810 = vset.pattern.permute.xlu0 29
      %811 = vperm.xlu0 %810, %v230
      %v812 = vpop.permute.xlu0 %811
      %v814 = vlaneseq
      %v815 = vshrl.u32 %v814, 7
      %v816 = vsub.s32 1, %v815
      %v817 = vrot.slane %v756, %v816
      %v818 = vlaneseq
      %v819 = vshrl.u32 %v818, 7
      %v820 = vsub.s32 5, %v819
      %v821 = vrot.slane %v756, %v820
      %v822 = vlaneseq
      %v823 = vshrl.u32 %v822, 7
      %v824 = vsub.s32 1, %v823
      %v825 = vrot.slane %v757, %v824
      %v829 = vlaneseq
      %v830 = vshrl.u32 %v829, 7
      %v831 = vsub.s32 1, %v830
      %v832 = vrot.slane %v817, %v831
      %v833 = vlaneseq
      %v834 = vshrl.u32 %v833, 7
      %v835 = vsub.s32 1, %v834
      %v836 = vrot.slane %v821, %v835
      %v837 = vlaneseq
      %v838 = vshrl.u32 %v837, 7
      %v839 = vsub.s32 1, %v838
      %v840 = vrot.slane %v825, %v839
      %v841 = vmul.f32 %v812, %v832
      %v842 = vmul.f32 %v812, %v836
      %v843 = vmul.f32 %v812, %v840
      %847 = vrot.lane.b32.xlu0 %v841, 95
      %v848 = vpop.permute.xlu0 %847
      %849 = vrot.lane.b32.xlu0 %v842, 95
      %v850 = vpop.permute.xlu0 %849
      %851 = vrot.lane.b32.xlu0 %v843, 95
      %v852 = vpop.permute.xlu0 %851
      %v853 = vsel %vm803, %v848, %v850
      %v854 = vsel %vm803, %v850, %v852
      %v857 = vadd.f32 %v808, %v853
      %v858 = vadd.f32 %v809, %v854
      %859 = vset.pattern.permute.xlu0 30
      %860 = vperm.xlu0 %859, %v230
      %v861 = vpop.permute.xlu0 %860
      %v863 = vlaneseq
      %v864 = vshrl.u32 %v863, 7
      %v865 = vsub.s32 2, %v864
      %v866 = vrot.slane %v756, %v865
      %v867 = vlaneseq
      %v868 = vshrl.u32 %v867, 7
      %v869 = vsub.s32 6, %v868
      %v870 = vrot.slane %v756, %v869
      %v871 = vlaneseq
      %v872 = vshrl.u32 %v871, 7
      %v873 = vsub.s32 2, %v872
      %v874 = vrot.slane %v757, %v873
      %v878 = vlaneseq
      %v879 = vshrl.u32 %v878, 7
      %v880 = vsub.s32 2, %v879
      %v881 = vrot.slane %v866, %v880
      %v882 = vlaneseq
      %v883 = vshrl.u32 %v882, 7
      %v884 = vsub.s32 2, %v883
      %v885 = vrot.slane %v870, %v884
      %v886 = vlaneseq
      %v887 = vshrl.u32 %v886, 7
      %v888 = vsub.s32 2, %v887
      %v889 = vrot.slane %v874, %v888
      %v890 = vmul.f32 %v861, %v881
      %v891 = vmul.f32 %v861, %v885
      %v892 = vmul.f32 %v861, %v889
      %896 = vrot.lane.b32.xlu0 %v890, 95
      %v897 = vpop.permute.xlu0 %896
      %898 = vrot.lane.b32.xlu0 %v891, 95
      %v899 = vpop.permute.xlu0 %898
      %900 = vrot.lane.b32.xlu0 %v892, 95
      %v901 = vpop.permute.xlu0 %900
      %v902 = vsel %vm803, %v897, %v899
      %v903 = vsel %vm803, %v899, %v901
      %v906 = vadd.f32 %v857, %v902
      %v907 = vadd.f32 %v858, %v903
      %908 = vset.pattern.permute.xlu0 31
      %909 = vperm.xlu0 %908, %v230
      %v910 = vpop.permute.xlu0 %909
      %v912 = vlaneseq
      %v913 = vshrl.u32 %v912, 7
      %v914 = vsub.s32 3, %v913
      %v915 = vrot.slane %v756, %v914
      %v916 = vlaneseq
      %v917 = vshrl.u32 %v916, 7
      %v918 = vsub.s32 7, %v917
      %v919 = vrot.slane %v756, %v918
      %v920 = vlaneseq
      %v921 = vshrl.u32 %v920, 7
      %v922 = vsub.s32 3, %v921
      %v923 = vrot.slane %v757, %v922
      %v927 = vlaneseq
      %v928 = vshrl.u32 %v927, 7
      %v929 = vsub.s32 3, %v928
      %v930 = vrot.slane %v915, %v929
      %v931 = vlaneseq
      %v932 = vshrl.u32 %v931, 7
      %v933 = vsub.s32 3, %v932
      %v934 = vrot.slane %v919, %v933
      %v935 = vlaneseq
      %v936 = vshrl.u32 %v935, 7
      %v937 = vsub.s32 3, %v936
      %v938 = vrot.slane %v923, %v937
      %v939 = vmul.f32 %v910, %v930
      %v940 = vmul.f32 %v910, %v934
      %v941 = vmul.f32 %v910, %v938
      %945 = vrot.lane.b32.xlu0 %v939, 95
      %v946 = vpop.permute.xlu0 %945
      %947 = vrot.lane.b32.xlu0 %v940, 95
      %v948 = vpop.permute.xlu0 %947
      %949 = vrot.lane.b32.xlu0 %v941, 95
      %v950 = vpop.permute.xlu0 %949
      %v951 = vsel %vm803, %v946, %v948
      %v952 = vsel %vm803, %v948, %v950
      %v955 = vadd.f32 %v906, %v951
      %v956 = vadd.f32 %v907, %v952
      %957 = vset.pattern.permute.xlu0 32
      %958 = vperm.xlu0 %957, %v230
      %v959 = vpop.permute.xlu0 %958
      %v961 = vmul.f32 %v959, %v782
      %v962 = vmul.f32 %v959, %v786
      %v963 = vmul.f32 %v959, %v790
      %967 = vrot.lane.b32.xlu0 %v961, 94
      %v968 = vpop.permute.xlu0 %967
      %969 = vrot.lane.b32.xlu0 %v962, 94
      %v970 = vpop.permute.xlu0 %969
      %971 = vrot.lane.b32.xlu0 %v963, 94
      %v972 = vpop.permute.xlu0 %971
      %vm973 = vcmask 769024
      %v974 = vsel %vm973, %v968, %v970
      %v975 = vsel %vm973, %v970, %v972
      %v978 = vadd.f32 %v955, %v974
      %v979 = vadd.f32 %v956, %v975
      %980 = vset.pattern.permute.xlu0 33
      %981 = vperm.xlu0 %980, %v230
      %v982 = vpop.permute.xlu0 %981
      %v984 = vmul.f32 %v982, %v832
      %v985 = vmul.f32 %v982, %v836
      %v986 = vmul.f32 %v982, %v840
      %990 = vrot.lane.b32.xlu0 %v984, 94
      %v991 = vpop.permute.xlu0 %990
      %992 = vrot.lane.b32.xlu0 %v985, 94
      %v993 = vpop.permute.xlu0 %992
      %994 = vrot.lane.b32.xlu0 %v986, 94
      %v995 = vpop.permute.xlu0 %994
      %v996 = vsel %vm973, %v991, %v993
      %v997 = vsel %vm973, %v993, %v995
      %v1000 = vadd.f32 %v978, %v996
      %v1001 = vadd.f32 %v979, %v997
      %1002 = vset.pattern.permute.xlu0 34
      %1003 = vperm.xlu0 %1002, %v230
      %v1004 = vpop.permute.xlu0 %1003
      %v1006 = vmul.f32 %v1004, %v881
      %v1007 = vmul.f32 %v1004, %v885
      %v1008 = vmul.f32 %v1004, %v889
      %1012 = vrot.lane.b32.xlu0 %v1006, 94
      %v1013 = vpop.permute.xlu0 %1012
      %1014 = vrot.lane.b32.xlu0 %v1007, 94
      %v1015 = vpop.permute.xlu0 %1014
      %1016 = vrot.lane.b32.xlu0 %v1008, 94
      %v1017 = vpop.permute.xlu0 %1016
      %v1018 = vsel %vm973, %v1013, %v1015
      %v1019 = vsel %vm973, %v1015, %v1017
      %v1022 = vadd.f32 %v1000, %v1018
      %v1023 = vadd.f32 %v1001, %v1019
      %1024 = vset.pattern.permute.xlu0 35
      %1025 = vperm.xlu0 %1024, %v230
      %v1026 = vpop.permute.xlu0 %1025
      %v1028 = vmul.f32 %v1026, %v930
      %v1029 = vmul.f32 %v1026, %v934
      %v1030 = vmul.f32 %v1026, %v938
      %1034 = vrot.lane.b32.xlu0 %v1028, 94
      %v1035 = vpop.permute.xlu0 %1034
      %1036 = vrot.lane.b32.xlu0 %v1029, 94
      %v1037 = vpop.permute.xlu0 %1036
      %1038 = vrot.lane.b32.xlu0 %v1030, 94
      %v1039 = vpop.permute.xlu0 %1038
      %v1040 = vsel %vm973, %v1035, %v1037
      %v1041 = vsel %vm973, %v1037, %v1039
      %v1044 = vadd.f32 %v1022, %v1040
      %v1045 = vadd.f32 %v1023, %v1041
      %v1046 = vxor.u32 %v1044, 2147483648
      %v1047 = vxor.u32 %v1045, 2147483648
      %v1048 = vmul.f32 %v1046, 1.442695
      %v1049 = vpow.pop %v1048
      %v1050 = vmul.f32 %v1047, 1.442695
      %v1051 = vpow.pop %v1050
      %v1052 = vadd.f32 %v1049, 1.0
      %v1053 = vadd.f32 %v1051, 1.0
      %v1054 = vrcp.pop %v1052
      %v1055 = vmul.f32 1.0, %v1054
      %v1056 = vrcp.pop %v1053
      %v1057 = vmul.f32 1.0, %v1056
      %vm1058 = vcmask 108544
      %1059 = vst.msk [vmem:[%s143] sm:$0x7] %vm1058, %v1055
      %1061 = vrot.lane.b32.xlu0 %v1055, 126
      %v1062 = vpop.permute.xlu0 %1061
      %vm1064 = vcmask 223344
      %1065 = vst.msk [vmem:[%s143] sm:$0x7] %vm1064, %v1062
      %1066 = vrot.lane.b32.xlu0 %v1055, 124
      %v1067 = vpop.permute.xlu0 %1066
      %vm1069 = vcmask 338144
      %1070 = vst.msk [vmem:[%s143] sm:$0x7] %vm1069, %v1067
      %1071 = vrot.lane.b32.xlu0 %v1055, 122
      %v1072 = vpop.permute.xlu0 %1071
      %vm1074 = vcmask 452944
      %1075 = vst.msk [vmem:[%s143] sm:$0x7] %vm1074, %v1072
      %1076 = vrot.lane.b32.xlu0 %v1055, 120
      %v1077 = vpop.permute.xlu0 %1076
      %vm1079 = vcmask 567744
      %1080 = vst.msk [vmem:[%s143] sm:$0x7] %vm1079, %v1077
      %1081 = vrot.lane.b32.xlu0 %v1055, 118
      %v1082 = vpop.permute.xlu0 %1081
      %vm1084 = vcmask 682544
      %1085 = vst.msk [vmem:[%s143] sm:$0x7] %vm1084, %v1082
      %1086 = vrot.lane.b32.xlu0 %v1055, 116
      %v1087 = vpop.permute.xlu0 %1086
      %vm1089 = vcmask 797344
      %1090 = vst.msk [vmem:[%s143] sm:$0x7] %vm1089, %v1087
      %1091 = vrot.lane.b32.xlu0 %v1055, 114
      %v1092 = vpop.permute.xlu0 %1091
      %vm1094 = vcmask 912144
      %1095 = vst.msk [vmem:[%s143] sm:$0x7] %vm1094, %v1092
      %1097 = vrot.lane.b32.xlu0 %v1057, 112
      %v1098 = vpop.permute.xlu0 %1097
      %vm1100 = vcmask 1026944
      %1101 = vst.msk [vmem:[%s143] sm:$0x7] %vm1100, %v1098
      %1102 = vrot.lane.b32.xlu0 %v1057, 110
      %v1103 = vpop.permute.xlu0 %1102
      %v1104 = vrot.slane %v1103, 4
      %v1105 = vsel %vm630, %v1104, %v1103
      %vm1107 = vcmask 1043440
      %vm1108 = vcmask 96260
      %vm1109 = vmor %vm1108, %vm1107
      %1110 = vst.msk [vmem:[%s143] sm:$0x77] %vm1109, %v1105
      %1111 = vrot.lane.b32.xlu0 %v1057, 108
      %v1112 = vpop.permute.xlu0 %1111
      %vm1114 = vcmask 206944
      %1115 = vst.msk [vmem:[%s143 + $0x4] sm:$0x7] %vm1114, %v1112
      %1116 = vrot.lane.b32.xlu0 %v1057, 106
      %v1117 = vpop.permute.xlu0 %1116
      %vm1119 = vcmask 321744
      %1120 = vst.msk [vmem:[%s143 + $0x4] sm:$0x7] %vm1119, %v1117
      %1121 = vrot.lane.b32.xlu0 %v1057, 104
      %v1122 = vpop.permute.xlu0 %1121
      %vm1124 = vcmask 436544
      %1125 = vst.msk [vmem:[%s143 + $0x4] sm:$0x7] %vm1124, %v1122
      %1126 = vrot.lane.b32.xlu0 %v1057, 102
      %v1127 = vpop.permute.xlu0 %1126
      %vm1129 = vcmask 551344
      %1130 = vst.msk [vmem:[%s143 + $0x4] sm:$0x7] %vm1129, %v1127
      %p1131 = scmp.lt.s32.totalorder %s13, 1
      %s1132 = scalar_select %p1131, %s13, 1
      %s1133 = smul.addr %s1132, 2
      %s1134 = smul.addr %s1133, 4
      %s1135 = scalar_lea.vmem %s2, %s1134
      // Predicated region
      $region29: #{conv_transpose2d_sigmoid.1} parent=27 // pred_check
        %p1136 = pneg %p78
      $region30: #{conv_transpose2d_sigmoid.1} parent=27 // pred_check_branch
        %1138 = sbr.rel (%p1136) target = $region32
      $region31: #{conv_transpose2d_sigmoid.1} parent=27 // pred_region
        _
      $region32: #{conv_transpose2d_sigmoid.1} parent=27 // pred_fallthru
        _
    $region28: #{conv_transpose2d_sigmoid.1} parent=5 // pred_fallthru
      _
    %p1139 = scmp.le.s32.totalorder 2, %s8
    // Predicated region
    $region33: #{conv_transpose2d_sigmoid.1} parent=5 // pred_check
      %p1140 = pneg %p1139
    $region34: #{conv_transpose2d_sigmoid.1} parent=5 // pred_check_branch
      %1142 = sbr.rel (%p1140) target = $region36
    $region35: #{conv_transpose2d_sigmoid.1} parent=5 // pred_region
      %s1143 = ssub.s32 %s8, 2
      // Predicated region
      $region37: #{conv_transpose2d_sigmoid.1} parent=35 // pred_check
        %p1144 = pneg %p84
      $region38: #{conv_transpose2d_sigmoid.1} parent=35 // pred_check_branch
        %1146 = sbr.rel (%p1144) target = $region40
      $region39: #{conv_transpose2d_sigmoid.1} parent=35 // pred_region
        %p1147 = scmp.lt.s32.totalorder %s14, 1
        %s1148 = scalar_select %p1147, %s14, 1
        %s1149 = smul.addr %s1148, 2
        %s1150 = smul.addr %s1149, 4
        %s1151 = scalar_lea.vmem %s2, %s1150
      $region40: #{conv_transpose2d_sigmoid.1} parent=35 // pred_fallthru
        _
    $region36: #{conv_transpose2d_sigmoid.1} parent=5 // pred_fallthru
      _
  $region6: #{conv_transpose2d_sigmoid.1} parent=0 // loop_footer
    %s12 = sadd.s32 1, %s8
  $region7: #{conv_transpose2d_sigmoid.1} parent=0 // loop_footer_branch
    %7 = sbr.rel target = $region3
  $region8: #{conv_transpose2d_sigmoid.1} parent=0 // loop_exit
    _

</llo_original>
